<compile_context>
chip_gen: v6e
topology: v6e:2x2x1
jax: 0.10.0
libtpu: 0.0.40
codegen_flags: <defaults>
</compile_context>

<pallas_src>
import functools

import jax
import jax.numpy as jnp
import numpy as np
from jax import lax
from jax.experimental import pallas as pl
from jax.experimental.pallas import tpu as pltpu

EPS = 1e-5  # torch.nn.BatchNorm1d default eps


def _head_kernel(
    e1_ref, e1m_ref, e1p_ref,
    rel_ref, relm_ref, relp_ref,
    tim_ref, timm_ref, timp_ref,
    bn0_g_ref, bn0_b_ref, conv_w_ref, conv_b_ref,
    bn1_g_ref, bn1_b_ref,
    fc_w_ref, fc_b_ref, bn2_g_ref, bn2_b_ref,
    z_ref, *, batch, emb_dim, channels):
  """Fused head: tanh, bn0, conv1, bn1, relu, fc, bn2, relu -> z (B, D)."""
  f32 = jnp.float32

  # Boundary masks for the zero-padded conv taps (O(B*D) VPU work, built once).
  col = lax.broadcasted_iota(jnp.int32, (batch, emb_dim), 1)
  mask_m1 = (col >= 1).astype(f32)            # tap x[:, d-1] is 0 at d == 0
  mask_p1 = (col <= emb_dim - 2).astype(f32)  # tap x[:, d+1] is 0 at d == D-1

  def channel_taps(x_c, x_m1, x_p1, c):
    # Train-mode BatchNorm1d stats over (B, D) for this input channel, folded
    # into an affine a*x + b that is applied to the zero-padded shifted taps.
    mu = jnp.mean(x_c)
    var = jnp.mean((x_c - mu) ** 2)
    a = bn0_g_ref[0, c] * lax.rsqrt(var + EPS)
    b = bn0_b_ref[0, c] - a * mu
    return [a * x_m1 + b * mask_m1, a * x_c + b, a * x_p1 + b * mask_p1]

  # tanh commutes with the zero-padded shifts since tanh(0) == 0.
  taps = []
  taps += channel_taps(jnp.tanh(e1_ref[...]), jnp.tanh(e1m_ref[...]),
                       jnp.tanh(e1p_ref[...]), 0)
  taps += channel_taps(rel_ref[...], relm_ref[...], relp_ref[...], 1)
  taps += channel_taps(tim_ref[...], timm_ref[...], timp_ref[...], 2)

  def tree_sum(terms):  # balanced add tree -> short VALU critical path
    while len(terms) > 1:
      nxt = [terms[i] + terms[i + 1] for i in range(0, len(terms) - 1, 2)]
      if len(terms) % 2:
        nxt.append(terms[-1])
      terms = nxt
    return terms[0]

  acts = []
  for c in range(channels):
    w_c = [conv_w_ref[c, n] for n in range(9)]   # hoisted scalar reads
    y = tree_sum([taps[n] * w_c[n] for n in range(9)]) + conv_b_ref[0, c]
    mu = jnp.mean(y)                             # bn1: stats over (B, D)
    var = jnp.mean((y - mu) ** 2)
    y = (y - mu) * lax.rsqrt(var + EPS) * bn1_g_ref[0, c] + bn1_b_ref[0, c]
    acts.append(jnp.maximum(y, 0.0))
  # inp_drop / feature_map_drop / hidden_drop all have p = 0 -> identity.

  # Fused fc: one (B, C*D) @ (C*D, D) matmul instead of C small dots.
  # (D is a multiple of 128 here, so the lane concatenation is tile-aligned.)
  h = jnp.concatenate(acts, axis=-1)
  z = jnp.dot(h, fc_w_ref[...], preferred_element_type=f32) + fc_b_ref[...]

  if batch > 1:  # torch skips bn2 when batch_size == 1
    mu = jnp.mean(z, axis=0, keepdims=True)
    var = jnp.mean((z - mu) ** 2, axis=0, keepdims=True)
    z = (z - mu) * lax.rsqrt(var + EPS) * bn2_g_ref[...] + bn2_b_ref[...]
  z_ref[...] = jnp.maximum(z, 0.0)


def _score_kernel(z_ref, emb_t_ref, out_ref):
  # Per (D, TILE_E) bf16 block of the entity table: upcast, tanh, score.
  e = jnp.tanh(emb_t_ref[...].astype(jnp.float32))
  out_ref[...] = jnp.dot(z_ref[...], e, preferred_element_type=jnp.float32)
  # TODO(synk): partial_embeding branch (elementwise mask on the score block)
  # could be fused here as one extra (B, TILE_E) input block.


def time_conv_transe_forward(embedding, eid, emb_rel, emb_time, params,
                             *, emb_t_bf16=None, tile_e=512):
  E, D = embedding.shape
  B = int(eid.shape[0])
  C, _, K = params["conv_w"].shape
  assert K == 3, "kernel assumes conv kernel_size == 3"
  # Note: the registered parameter 'b' is never used in the torch forward.

  # --- XLA glue: gather + zero-padded +-1 shifts of the 3 raw input channels.
  def shifts(x):
    xm1 = jnp.pad(x, ((0, 0), (1, 0)))[:, :D]   # xm1[:, d] = x[:, d-1], 0 at d=0
    xp1 = jnp.pad(x, ((0, 0), (0, 1)))[:, 1:]   # xp1[:, d] = x[:, d+1], 0 at d=D-1
    return xm1, xp1

  e1 = embedding[eid]
  e1_m1, e1_p1 = shifts(e1)
  rel_m1, rel_p1 = shifts(emb_rel)
  tim_m1, tim_p1 = shifts(emb_time)

  # --- parameter reshapes (layout plumbing only).
  conv_w2 = params["conv_w"].reshape(C, 3 * K)          # (C, 9), n = cin*3 + k
  conv_b2 = params["conv_b"].reshape(1, C)
  bn0_g = params["bn0_g"].reshape(1, 3)
  bn0_b = params["bn0_b"].reshape(1, 3)
  bn1_g = params["bn1_g"].reshape(1, C)
  bn1_b = params["bn1_b"].reshape(1, C)
  bn2_g = params["bn2_g"].reshape(1, D)
  bn2_b = params["bn2_b"].reshape(1, D)
  fc_w2 = params["fc_w"].T                              # (C*D, D), rows = c*D + d
  fc_b2 = params["fc_b"].reshape(1, D)

  vmem = pl.BlockSpec(memory_space=pltpu.MemorySpace.VMEM)
  smem = pl.BlockSpec(memory_space=pltpu.MemorySpace.SMEM)

  # --- kernel 1: fused head, produces z = (B, D) once.
  z = pl.pallas_call(
      functools.partial(_head_kernel, batch=B, emb_dim=D, channels=C),
      out_shape=jax.ShapeDtypeStruct((B, D), jnp.float32),
      in_specs=[vmem] * 9 + [smem] * 6 + [vmem] * 4,
      out_specs=vmem,
  )(e1, e1_m1, e1_p1, emb_rel, rel_m1, rel_p1, emb_time, tim_m1, tim_p1,
    bn0_g, bn0_b, conv_w2, conv_b2, bn1_g, bn1_b,
    fc_w2, fc_b2, bn2_g, bn2_b)

  # --- persistent bf16, transposed, lane-padded score table.  In production
  # this must be built ONCE (outside the per-call path); it is accepted as an
  # argument for exactly that reason.  Fallback builds it here.
  if emb_t_bf16 is None:
    e_pad = ((E + tile_e - 1) // tile_e) * tile_e
    emb_t_bf16 = (jnp.zeros((D, e_pad), jnp.bfloat16)
                  .at[:, :E].set(embedding.T.astype(jnp.bfloat16)))
  d_t, E_pad = emb_t_bf16.shape
  assert d_t == D and E_pad >= E and E_pad % tile_e == 0

  # --- kernel 2: scoring against the whole entity table, tiled/pipelined on E.
  scores = pl.pallas_call(
      _score_kernel,
      out_shape=jax.ShapeDtypeStruct((B, E_pad), jnp.float32),
      grid=(E_pad // tile_e,),
      in_specs=[pl.BlockSpec((B, D), lambda i: (0, 0)),        # z: resident
                pl.BlockSpec((D, tile_e), lambda i: (0, i))],  # streamed table
      out_specs=pl.BlockSpec((B, tile_e), lambda i: (0, i)),   # lane-dense out
      compiler_params=pltpu.CompilerParams(
          dimension_semantics=("parallel",),       # megacore-shardable E axis
          vmem_limit_bytes=32 * 1024 * 1024),      # explicit; fits v7x budget
  )(z, emb_t_bf16)

  return scores[:, :E]


def reference_forward(embedding, eid, emb_rel, emb_time, params,
                      score_table_bf16=None):
  """Pure JAX/XLA reference mirroring the PyTorch forward (train-mode BN)."""
  E, D = embedding.shape
  e_all = jnp.tanh(embedding)
  B = eid.shape[0]
  x = jnp.stack([e_all[eid], emb_rel, emb_time], axis=1)    # (B, 3, D)

  def bn(x, g, b, axes):
    mu = x.mean(axis=axes, keepdims=True)
    var = ((x - mu) ** 2).mean(axis=axes, keepdims=True)
    return (x - mu) / jnp.sqrt(var + EPS) * g + b

  x = bn(x, params["bn0_g"][None, :, None], params["bn0_b"][None, :, None], (0, 2))
  x = lax.conv_general_dilated(
      x, params["conv_w"], window_strides=(1,), padding=[(1, 1)],
      dimension_numbers=("NCH", "OIH", "NCH")) + params["conv_b"][None, :, None]
  x = bn(x, params["bn1_g"][None, :, None], params["bn1_b"][None, :, None], (0, 2))
  x = jnp.maximum(x, 0.0)
  x = x.reshape(B, -1)
  x = x @ params["fc_w"].T + params["fc_b"]
  if B > 1:
    x = bn(x, params["bn2_g"][None, :], params["bn2_b"][None, :], (0,))
  x = jnp.maximum(x, 0.0)
  if score_table_bf16 is not None:
    # Score against the same bf16-quantized table the kernel streams so the
    # check isolates kernel error from the (intentional) bf16 storage choice.
    e_score = jnp.tanh(score_table_bf16.astype(jnp.float32))   # (D, E_pad)
    return (x @ e_score)[:, :E]
  return x @ e_all.T


if __name__ == "__main__":
  key = jax.random.PRNGKey(0)
  ks = jax.random.split(key, 16)
  # Small but well-shaped: E and TILE_E multiples of 128, B multiple of 8.
  E, D, B, C, K = 512, 128, 8, 8, 3
  TILE_E = 128

  embedding = jax.random.normal(ks[0], (E, D), jnp.float32)
  eid = jax.random.randint(ks[1], (B,), 0, E)
  emb_rel = jax.random.normal(ks[2], (B, D), jnp.float32)
  emb_time = jax.random.normal(ks[3], (B, D), jnp.float32)

  params = dict(
      conv_w=jax.random.normal(ks[4], (C, 3, K), jnp.float32) / np.sqrt(3 * K),
      conv_b=0.1 * jax.random.normal(ks[5], (C,), jnp.float32),
      bn0_g=1.0 + 0.1 * jax.random.normal(ks[6], (3,), jnp.float32),
      bn0_b=0.1 * jax.random.normal(ks[7], (3,), jnp.float32),
      bn1_g=1.0 + 0.1 * jax.random.normal(ks[8], (C,), jnp.float32),
      bn1_b=0.1 * jax.random.normal(ks[9], (C,), jnp.float32),
      bn2_g=1.0 + 0.1 * jax.random.normal(ks[10], (D,), jnp.float32),
      bn2_b=0.1 * jax.random.normal(ks[11], (D,), jnp.float32),
      fc_w=jax.random.normal(ks[12], (D, C * D), jnp.float32) / np.sqrt(C * D),
      fc_b=0.1 * jax.random.normal(ks[13], (D,), jnp.float32),
      b=jnp.zeros((E,), jnp.float32),   # registered parameter 'b'; unused in fwd
  )

  # Persistent bf16 / transposed / lane-padded copy of the entity table, built
  # once outside the per-call path (per perf guidance).
  E_pad = ((E + TILE_E - 1) // TILE_E) * TILE_E
  emb_t_bf16 = (jnp.zeros((D, E_pad), jnp.bfloat16)
                .at[:, :E].set(embedding.T.astype(jnp.bfloat16)))

  out = jax.block_until_ready(
      time_conv_transe_forward(embedding, eid, emb_rel, emb_time, params,
                               emb_t_bf16=emb_t_bf16, tile_e=TILE_E))
  ref = jax.block_until_ready(
      reference_forward(embedding, eid, emb_rel, emb_time, params,
                        score_table_bf16=emb_t_bf16))
  np.testing.assert_allclose(np.asarray(out), np.asarray(ref),
                             rtol=2e-3, atol=2e-3)
  print("KERNEL_OK")
</pallas_src>

<mosaic_0001>
module attributes {stable_mosaic.version = 11 : i64} {
  func.func @_head_kernel(%arg0: memref<8x128xf32, #tpu.memory_space<vmem>>, %arg1: memref<8x128xf32, #tpu.memory_space<vmem>>, %arg2: memref<8x128xf32, #tpu.memory_space<vmem>>, %arg3: memref<8x128xf32, #tpu.memory_space<vmem>>, %arg4: memref<8x128xf32, #tpu.memory_space<vmem>>, %arg5: memref<8x128xf32, #tpu.memory_space<vmem>>, %arg6: memref<8x128xf32, #tpu.memory_space<vmem>>, %arg7: memref<8x128xf32, #tpu.memory_space<vmem>>, %arg8: memref<8x128xf32, #tpu.memory_space<vmem>>, %arg9: memref<1x3xf32, #tpu.memory_space<smem>>, %arg10: memref<1x3xf32, #tpu.memory_space<smem>>, %arg11: memref<8x9xf32, #tpu.memory_space<smem>>, %arg12: memref<1x8xf32, #tpu.memory_space<smem>>, %arg13: memref<1x8xf32, #tpu.memory_space<smem>>, %arg14: memref<1x8xf32, #tpu.memory_space<smem>>, %arg15: memref<1024x128xf32, #tpu.memory_space<vmem>>, %arg16: memref<1x128xf32, #tpu.memory_space<vmem>>, %arg17: memref<1x128xf32, #tpu.memory_space<vmem>>, %arg18: memref<1x128xf32, #tpu.memory_space<vmem>>, %arg19: memref<8x128xf32, #tpu.memory_space<vmem>>) attributes {dimension_semantics = [], scalar_prefetch = 0 : i64, scratch_operands = 0 : i64, tpu.core_type = #tpu.core_type<tc>} {
    %0 = tpu.iota {dimensions = array<i32: 1>} : vector<8x128xi32>
    %c1_i32 = arith.constant 1 : i32
    %1 = vector.broadcast %c1_i32 : i32 to vector<8x128xi32>
    %2 = arith.cmpi sge, %0, %1 : vector<8x128xi32>
    %3 = arith.extui %2 : vector<8x128xi1> to vector<8x128xi32>
    %4 = arith.sitofp %3 : vector<8x128xi32> to vector<8x128xf32>
    %c126_i32 = arith.constant 126 : i32
    %5 = vector.broadcast %c126_i32 : i32 to vector<8x128xi32>
    %6 = arith.cmpi sle, %0, %5 : vector<8x128xi32>
    %7 = arith.extui %6 : vector<8x128xi1> to vector<8x128xi32>
    %8 = arith.sitofp %7 : vector<8x128xi32> to vector<8x128xf32>
    %c0 = arith.constant 0 : index
    %c0_0 = arith.constant 0 : index
    %9 = vector.load %arg0[%c0, %c0_0] : memref<8x128xf32, #tpu.memory_space<vmem>>, vector<8x128xf32>
    %10 = math.tanh %9 : vector<8x128xf32>
    %c0_1 = arith.constant 0 : index
    %c0_2 = arith.constant 0 : index
    %11 = vector.load %arg1[%c0_1, %c0_2] : memref<8x128xf32, #tpu.memory_space<vmem>>, vector<8x128xf32>
    %12 = math.tanh %11 : vector<8x128xf32>
    %c0_3 = arith.constant 0 : index
    %c0_4 = arith.constant 0 : index
    %13 = vector.load %arg2[%c0_3, %c0_4] : memref<8x128xf32, #tpu.memory_space<vmem>>, vector<8x128xf32>
    %14 = math.tanh %13 : vector<8x128xf32>
    %15 = vector.shape_cast %10 : vector<8x128xf32> to vector<1x8x128xf32>
    %cst = arith.constant dense<0.000000e+00> : vector<1xf32>
    %16 = vector.multi_reduction <add>, %15, %cst [1, 2] : vector<1x8x128xf32> to vector<1xf32>
    %17 = vector.shape_cast %16 : vector<1xf32> to vector<1x1x1xf32>
    %18 = vector.extract %17[0, 0, 0] : f32 from vector<1x1x1xf32>
    %cst_5 = arith.constant 1.024000e+03 : f32
    %19 = arith.divf %18, %cst_5 : f32
    %20 = vector.broadcast %19 : f32 to vector<8x128xf32>
    %21 = arith.subf %10, %20 : vector<8x128xf32>
    %22 = arith.mulf %21, %21 : vector<8x128xf32>
    %23 = vector.shape_cast %22 : vector<8x128xf32> to vector<1x8x128xf32>
    %cst_6 = arith.constant dense<0.000000e+00> : vector<1xf32>
    %24 = vector.multi_reduction <add>, %23, %cst_6 [1, 2] : vector<1x8x128xf32> to vector<1xf32>
    %25 = vector.shape_cast %24 : vector<1xf32> to vector<1x1x1xf32>
    %26 = vector.extract %25[0, 0, 0] : f32 from vector<1x1x1xf32>
    %cst_7 = arith.constant 1.024000e+03 : f32
    %27 = arith.divf %26, %cst_7 : f32
    %c0_8 = arith.constant 0 : index
    %c0_9 = arith.constant 0 : index
    %28 = memref.load %arg9[%c0_8, %c0_9] : memref<1x3xf32, #tpu.memory_space<smem>>
    %cst_10 = arith.constant 9.99999974E-6 : f32
    %29 = arith.addf %27, %cst_10 : f32
    %30 = math.rsqrt %29 : f32
    %31 = arith.mulf %28, %30 : f32
    %c0_11 = arith.constant 0 : index
    %c0_12 = arith.constant 0 : index
    %32 = memref.load %arg10[%c0_11, %c0_12] : memref<1x3xf32, #tpu.memory_space<smem>>
    %33 = arith.mulf %31, %19 : f32
    %34 = arith.subf %32, %33 : f32
    %35 = vector.broadcast %31 : f32 to vector<8x128xf32>
    %36 = arith.mulf %35, %12 : vector<8x128xf32>
    %37 = vector.broadcast %34 : f32 to vector<8x128xf32>
    %38 = arith.mulf %37, %4 : vector<8x128xf32>
    %39 = arith.addf %36, %38 : vector<8x128xf32>
    %40 = vector.broadcast %31 : f32 to vector<8x128xf32>
    %41 = arith.mulf %40, %10 : vector<8x128xf32>
    %42 = vector.broadcast %34 : f32 to vector<8x128xf32>
    %43 = arith.addf %41, %42 : vector<8x128xf32>
    %44 = vector.broadcast %31 : f32 to vector<8x128xf32>
    %45 = arith.mulf %44, %14 : vector<8x128xf32>
    %46 = vector.broadcast %34 : f32 to vector<8x128xf32>
    %47 = arith.mulf %46, %8 : vector<8x128xf32>
    %48 = arith.addf %45, %47 : vector<8x128xf32>
    %c0_13 = arith.constant 0 : index
    %c0_14 = arith.constant 0 : index
    %49 = vector.load %arg3[%c0_13, %c0_14] : memref<8x128xf32, #tpu.memory_space<vmem>>, vector<8x128xf32>
    %c0_15 = arith.constant 0 : index
    %c0_16 = arith.constant 0 : index
    %50 = vector.load %arg4[%c0_15, %c0_16] : memref<8x128xf32, #tpu.memory_space<vmem>>, vector<8x128xf32>
    %c0_17 = arith.constant 0 : index
    %c0_18 = arith.constant 0 : index
    %51 = vector.load %arg5[%c0_17, %c0_18] : memref<8x128xf32, #tpu.memory_space<vmem>>, vector<8x128xf32>
    %52 = vector.shape_cast %49 : vector<8x128xf32> to vector<1x8x128xf32>
    %cst_19 = arith.constant dense<0.000000e+00> : vector<1xf32>
    %53 = vector.multi_reduction <add>, %52, %cst_19 [1, 2] : vector<1x8x128xf32> to vector<1xf32>
    %54 = vector.shape_cast %53 : vector<1xf32> to vector<1x1x1xf32>
    %55 = vector.extract %54[0, 0, 0] : f32 from vector<1x1x1xf32>
    %cst_20 = arith.constant 1.024000e+03 : f32
    %56 = arith.divf %55, %cst_20 : f32
    %57 = vector.broadcast %56 : f32 to vector<8x128xf32>
    %58 = arith.subf %49, %57 : vector<8x128xf32>
    %59 = arith.mulf %58, %58 : vector<8x128xf32>
    %60 = vector.shape_cast %59 : vector<8x128xf32> to vector<1x8x128xf32>
    %cst_21 = arith.constant dense<0.000000e+00> : vector<1xf32>
    %61 = vector.multi_reduction <add>, %60, %cst_21 [1, 2] : vector<1x8x128xf32> to vector<1xf32>
    %62 = vector.shape_cast %61 : vector<1xf32> to vector<1x1x1xf32>
    %63 = vector.extract %62[0, 0, 0] : f32 from vector<1x1x1xf32>
    %cst_22 = arith.constant 1.024000e+03 : f32
    %64 = arith.divf %63, %cst_22 : f32
    %c0_23 = arith.constant 0 : index
    %c1 = arith.constant 1 : index
    %65 = memref.load %arg9[%c0_23, %c1] : memref<1x3xf32, #tpu.memory_space<smem>>
    %cst_24 = arith.constant 9.99999974E-6 : f32
    %66 = arith.addf %64, %cst_24 : f32
    %67 = math.rsqrt %66 : f32
    %68 = arith.mulf %65, %67 : f32
    %c0_25 = arith.constant 0 : index
    %c1_26 = arith.constant 1 : index
    %69 = memref.load %arg10[%c0_25, %c1_26] : memref<1x3xf32, #tpu.memory_space<smem>>
    %70 = arith.mulf %68, %56 : f32
    %71 = arith.subf %69, %70 : f32
    %72 = vector.broadcast %68 : f32 to vector<8x128xf32>
    %73 = arith.mulf %72, %50 : vector<8x128xf32>
    %74 = vector.broadcast %71 : f32 to vector<8x128xf32>
    %75 = arith.mulf %74, %4 : vector<8x128xf32>
    %76 = arith.addf %73, %75 : vector<8x128xf32>
    %77 = vector.broadcast %68 : f32 to vector<8x128xf32>
    %78 = arith.mulf %77, %49 : vector<8x128xf32>
    %79 = vector.broadcast %71 : f32 to vector<8x128xf32>
    %80 = arith.addf %78, %79 : vector<8x128xf32>
    %81 = vector.broadcast %68 : f32 to vector<8x128xf32>
    %82 = arith.mulf %81, %51 : vector<8x128xf32>
    %83 = vector.broadcast %71 : f32 to vector<8x128xf32>
    %84 = arith.mulf %83, %8 : vector<8x128xf32>
    %85 = arith.addf %82, %84 : vector<8x128xf32>
    %c0_27 = arith.constant 0 : index
    %c0_28 = arith.constant 0 : index
    %86 = vector.load %arg6[%c0_27, %c0_28] : memref<8x128xf32, #tpu.memory_space<vmem>>, vector<8x128xf32>
    %c0_29 = arith.constant 0 : index
    %c0_30 = arith.constant 0 : index
    %87 = vector.load %arg7[%c0_29, %c0_30] : memref<8x128xf32, #tpu.memory_space<vmem>>, vector<8x128xf32>
    %c0_31 = arith.constant 0 : index
    %c0_32 = arith.constant 0 : index
    %88 = vector.load %arg8[%c0_31, %c0_32] : memref<8x128xf32, #tpu.memory_space<vmem>>, vector<8x128xf32>
    %89 = vector.shape_cast %86 : vector<8x128xf32> to vector<1x8x128xf32>
    %cst_33 = arith.constant dense<0.000000e+00> : vector<1xf32>
    %90 = vector.multi_reduction <add>, %89, %cst_33 [1, 2] : vector<1x8x128xf32> to vector<1xf32>
    %91 = vector.shape_cast %90 : vector<1xf32> to vector<1x1x1xf32>
    %92 = vector.extract %91[0, 0, 0] : f32 from vector<1x1x1xf32>
    %cst_34 = arith.constant 1.024000e+03 : f32
    %93 = arith.divf %92, %cst_34 : f32
    %94 = vector.broadcast %93 : f32 to vector<8x128xf32>
    %95 = arith.subf %86, %94 : vector<8x128xf32>
    %96 = arith.mulf %95, %95 : vector<8x128xf32>
    %97 = vector.shape_cast %96 : vector<8x128xf32> to vector<1x8x128xf32>
    %cst_35 = arith.constant dense<0.000000e+00> : vector<1xf32>
    %98 = vector.multi_reduction <add>, %97, %cst_35 [1, 2] : vector<1x8x128xf32> to vector<1xf32>
    %99 = vector.shape_cast %98 : vector<1xf32> to vector<1x1x1xf32>
    %100 = vector.extract %99[0, 0, 0] : f32 from vector<1x1x1xf32>
    %cst_36 = arith.constant 1.024000e+03 : f32
    %101 = arith.divf %100, %cst_36 : f32
    %c0_37 = arith.constant 0 : index
    %c2 = arith.constant 2 : index
    %102 = memref.load %arg9[%c0_37, %c2] : memref<1x3xf32, #tpu.memory_space<smem>>
    %cst_38 = arith.constant 9.99999974E-6 : f32
    %103 = arith.addf %101, %cst_38 : f32
    %104 = math.rsqrt %103 : f32
    %105 = arith.mulf %102, %104 : f32
    %c0_39 = arith.constant 0 : index
    %c2_40 = arith.constant 2 : index
    %106 = memref.load %arg10[%c0_39, %c2_40] : memref<1x3xf32, #tpu.memory_space<smem>>
    %107 = arith.mulf %105, %93 : f32
    %108 = arith.subf %106, %107 : f32
    %109 = vector.broadcast %105 : f32 to vector<8x128xf32>
    %110 = arith.mulf %109, %87 : vector<8x128xf32>
    %111 = vector.broadcast %108 : f32 to vector<8x128xf32>
    %112 = arith.mulf %111, %4 : vector<8x128xf32>
    %113 = arith.addf %110, %112 : vector<8x128xf32>
    %114 = vector.broadcast %105 : f32 to vector<8x128xf32>
    %115 = arith.mulf %114, %86 : vector<8x128xf32>
    %116 = vector.broadcast %108 : f32 to vector<8x128xf32>
    %117 = arith.addf %115, %116 : vector<8x128xf32>
    %118 = vector.broadcast %105 : f32 to vector<8x128xf32>
    %119 = arith.mulf %118, %88 : vector<8x128xf32>
    %120 = vector.broadcast %108 : f32 to vector<8x128xf32>
    %121 = arith.mulf %120, %8 : vector<8x128xf32>
    %122 = arith.addf %119, %121 : vector<8x128xf32>
    %c0_41 = arith.constant 0 : index
    %c0_42 = arith.constant 0 : index
    %123 = memref.load %arg11[%c0_41, %c0_42] : memref<8x9xf32, #tpu.memory_space<smem>>
    %c0_43 = arith.constant 0 : index
    %c1_44 = arith.constant 1 : index
    %124 = memref.load %arg11[%c0_43, %c1_44] : memref<8x9xf32, #tpu.memory_space<smem>>
    %c0_45 = arith.constant 0 : index
    %c2_46 = arith.constant 2 : index
    %125 = memref.load %arg11[%c0_45, %c2_46] : memref<8x9xf32, #tpu.memory_space<smem>>
    %c0_47 = arith.constant 0 : index
    %c3 = arith.constant 3 : index
    %126 = memref.load %arg11[%c0_47, %c3] : memref<8x9xf32, #tpu.memory_space<smem>>
    %c0_48 = arith.constant 0 : index
    %c4 = arith.constant 4 : index
    %127 = memref.load %arg11[%c0_48, %c4] : memref<8x9xf32, #tpu.memory_space<smem>>
    %c0_49 = arith.constant 0 : index
    %c5 = arith.constant 5 : index
    %128 = memref.load %arg11[%c0_49, %c5] : memref<8x9xf32, #tpu.memory_space<smem>>
    %c0_50 = arith.constant 0 : index
    %c6 = arith.constant 6 : index
    %129 = memref.load %arg11[%c0_50, %c6] : memref<8x9xf32, #tpu.memory_space<smem>>
    %c0_51 = arith.constant 0 : index
    %c7 = arith.constant 7 : index
    %130 = memref.load %arg11[%c0_51, %c7] : memref<8x9xf32, #tpu.memory_space<smem>>
    %c0_52 = arith.constant 0 : index
    %c8 = arith.constant 8 : index
    %131 = memref.load %arg11[%c0_52, %c8] : memref<8x9xf32, #tpu.memory_space<smem>>
    %132 = vector.broadcast %123 : f32 to vector<8x128xf32>
    %133 = arith.mulf %39, %132 : vector<8x128xf32>
    %134 = vector.broadcast %124 : f32 to vector<8x128xf32>
    %135 = arith.mulf %43, %134 : vector<8x128xf32>
    %136 = vector.broadcast %125 : f32 to vector<8x128xf32>
    %137 = arith.mulf %48, %136 : vector<8x128xf32>
    %138 = vector.broadcast %126 : f32 to vector<8x128xf32>
    %139 = arith.mulf %76, %138 : vector<8x128xf32>
    %140 = vector.broadcast %127 : f32 to vector<8x128xf32>
    %141 = arith.mulf %80, %140 : vector<8x128xf32>
    %142 = vector.broadcast %128 : f32 to vector<8x128xf32>
    %143 = arith.mulf %85, %142 : vector<8x128xf32>
    %144 = vector.broadcast %129 : f32 to vector<8x128xf32>
    %145 = arith.mulf %113, %144 : vector<8x128xf32>
    %146 = vector.broadcast %130 : f32 to vector<8x128xf32>
    %147 = arith.mulf %117, %146 : vector<8x128xf32>
    %148 = vector.broadcast %131 : f32 to vector<8x128xf32>
    %149 = arith.mulf %122, %148 : vector<8x128xf32>
    %150 = arith.addf %133, %135 : vector<8x128xf32>
    %151 = arith.addf %137, %139 : vector<8x128xf32>
    %152 = arith.addf %141, %143 : vector<8x128xf32>
    %153 = arith.addf %145, %147 : vector<8x128xf32>
    %154 = arith.addf %150, %151 : vector<8x128xf32>
    %155 = arith.addf %152, %153 : vector<8x128xf32>
    %156 = arith.addf %154, %155 : vector<8x128xf32>
    %157 = arith.addf %156, %149 : vector<8x128xf32>
    %c0_53 = arith.constant 0 : index
    %c0_54 = arith.constant 0 : index
    %158 = memref.load %arg12[%c0_53, %c0_54] : memref<1x8xf32, #tpu.memory_space<smem>>
    %159 = vector.broadcast %158 : f32 to vector<8x128xf32>
    %160 = arith.addf %157, %159 : vector<8x128xf32>
    %161 = vector.shape_cast %160 : vector<8x128xf32> to vector<1x8x128xf32>
    %cst_55 = arith.constant dense<0.000000e+00> : vector<1xf32>
    %162 = vector.multi_reduction <add>, %161, %cst_55 [1, 2] : vector<1x8x128xf32> to vector<1xf32>
    %163 = vector.shape_cast %162 : vector<1xf32> to vector<1x1x1xf32>
    %164 = vector.extract %163[0, 0, 0] : f32 from vector<1x1x1xf32>
    %cst_56 = arith.constant 1.024000e+03 : f32
    %165 = arith.divf %164, %cst_56 : f32
    %166 = vector.broadcast %165 : f32 to vector<8x128xf32>
    %167 = arith.subf %160, %166 : vector<8x128xf32>
    %168 = arith.mulf %167, %167 : vector<8x128xf32>
    %169 = vector.shape_cast %168 : vector<8x128xf32> to vector<1x8x128xf32>
    %cst_57 = arith.constant dense<0.000000e+00> : vector<1xf32>
    %170 = vector.multi_reduction <add>, %169, %cst_57 [1, 2] : vector<1x8x128xf32> to vector<1xf32>
    %171 = vector.shape_cast %170 : vector<1xf32> to vector<1x1x1xf32>
    %172 = vector.extract %171[0, 0, 0] : f32 from vector<1x1x1xf32>
    %cst_58 = arith.constant 1.024000e+03 : f32
    %173 = arith.divf %172, %cst_58 : f32
    %174 = vector.broadcast %165 : f32 to vector<8x128xf32>
    %175 = arith.subf %160, %174 : vector<8x128xf32>
    %cst_59 = arith.constant 9.99999974E-6 : f32
    %176 = arith.addf %173, %cst_59 : f32
    %177 = math.rsqrt %176 : f32
    %178 = vector.broadcast %177 : f32 to vector<8x128xf32>
    %179 = arith.mulf %175, %178 : vector<8x128xf32>
    %c0_60 = arith.constant 0 : index
    %c0_61 = arith.constant 0 : index
    %180 = memref.load %arg13[%c0_60, %c0_61] : memref<1x8xf32, #tpu.memory_space<smem>>
    %181 = vector.broadcast %180 : f32 to vector<8x128xf32>
    %182 = arith.mulf %179, %181 : vector<8x128xf32>
    %c0_62 = arith.constant 0 : index
    %c0_63 = arith.constant 0 : index
    %183 = memref.load %arg14[%c0_62, %c0_63] : memref<1x8xf32, #tpu.memory_space<smem>>
    %184 = vector.broadcast %183 : f32 to vector<8x128xf32>
    %185 = arith.addf %182, %184 : vector<8x128xf32>
    %cst_64 = arith.constant 0.000000e+00 : f32
    %186 = vector.broadcast %cst_64 : f32 to vector<8x128xf32>
    %187 = arith.maximumf %185, %186 : vector<8x128xf32>
    %c1_65 = arith.constant 1 : index
    %c0_66 = arith.constant 0 : index
    %188 = memref.load %arg11[%c1_65, %c0_66] : memref<8x9xf32, #tpu.memory_space<smem>>
    %c1_67 = arith.constant 1 : index
    %c1_68 = arith.constant 1 : index
    %189 = memref.load %arg11[%c1_67, %c1_68] : memref<8x9xf32, #tpu.memory_space<smem>>
    %c1_69 = arith.constant 1 : index
    %c2_70 = arith.constant 2 : index
    %190 = memref.load %arg11[%c1_69, %c2_70] : memref<8x9xf32, #tpu.memory_space<smem>>
    %c1_71 = arith.constant 1 : index
    %c3_72 = arith.constant 3 : index
    %191 = memref.load %arg11[%c1_71, %c3_72] : memref<8x9xf32, #tpu.memory_space<smem>>
    %c1_73 = arith.constant 1 : index
    %c4_74 = arith.constant 4 : index
    %192 = memref.load %arg11[%c1_73, %c4_74] : memref<8x9xf32, #tpu.memory_space<smem>>
    %c1_75 = arith.constant 1 : index
    %c5_76 = arith.constant 5 : index
    %193 = memref.load %arg11[%c1_75, %c5_76] : memref<8x9xf32, #tpu.memory_space<smem>>
    %c1_77 = arith.constant 1 : index
    %c6_78 = arith.constant 6 : index
    %194 = memref.load %arg11[%c1_77, %c6_78] : memref<8x9xf32, #tpu.memory_space<smem>>
    %c1_79 = arith.constant 1 : index
    %c7_80 = arith.constant 7 : index
    %195 = memref.load %arg11[%c1_79, %c7_80] : memref<8x9xf32, #tpu.memory_space<smem>>
    %c1_81 = arith.constant 1 : index
    %c8_82 = arith.constant 8 : index
    %196 = memref.load %arg11[%c1_81, %c8_82] : memref<8x9xf32, #tpu.memory_space<smem>>
    %197 = vector.broadcast %188 : f32 to vector<8x128xf32>
    %198 = arith.mulf %39, %197 : vector<8x128xf32>
    %199 = vector.broadcast %189 : f32 to vector<8x128xf32>
    %200 = arith.mulf %43, %199 : vector<8x128xf32>
    %201 = vector.broadcast %190 : f32 to vector<8x128xf32>
    %202 = arith.mulf %48, %201 : vector<8x128xf32>
    %203 = vector.broadcast %191 : f32 to vector<8x128xf32>
    %204 = arith.mulf %76, %203 : vector<8x128xf32>
    %205 = vector.broadcast %192 : f32 to vector<8x128xf32>
    %206 = arith.mulf %80, %205 : vector<8x128xf32>
    %207 = vector.broadcast %193 : f32 to vector<8x128xf32>
    %208 = arith.mulf %85, %207 : vector<8x128xf32>
    %209 = vector.broadcast %194 : f32 to vector<8x128xf32>
    %210 = arith.mulf %113, %209 : vector<8x128xf32>
    %211 = vector.broadcast %195 : f32 to vector<8x128xf32>
    %212 = arith.mulf %117, %211 : vector<8x128xf32>
    %213 = vector.broadcast %196 : f32 to vector<8x128xf32>
    %214 = arith.mulf %122, %213 : vector<8x128xf32>
    %215 = arith.addf %198, %200 : vector<8x128xf32>
    %216 = arith.addf %202, %204 : vector<8x128xf32>
    %217 = arith.addf %206, %208 : vector<8x128xf32>
    %218 = arith.addf %210, %212 : vector<8x128xf32>
    %219 = arith.addf %215, %216 : vector<8x128xf32>
    %220 = arith.addf %217, %218 : vector<8x128xf32>
    %221 = arith.addf %219, %220 : vector<8x128xf32>
    %222 = arith.addf %221, %214 : vector<8x128xf32>
    %c0_83 = arith.constant 0 : index
    %c1_84 = arith.constant 1 : index
    %223 = memref.load %arg12[%c0_83, %c1_84] : memref<1x8xf32, #tpu.memory_space<smem>>
    %224 = vector.broadcast %223 : f32 to vector<8x128xf32>
    %225 = arith.addf %222, %224 : vector<8x128xf32>
    %226 = vector.shape_cast %225 : vector<8x128xf32> to vector<1x8x128xf32>
    %cst_85 = arith.constant dense<0.000000e+00> : vector<1xf32>
    %227 = vector.multi_reduction <add>, %226, %cst_85 [1, 2] : vector<1x8x128xf32> to vector<1xf32>
    %228 = vector.shape_cast %227 : vector<1xf32> to vector<1x1x1xf32>
    %229 = vector.extract %228[0, 0, 0] : f32 from vector<1x1x1xf32>
    %cst_86 = arith.constant 1.024000e+03 : f32
    %230 = arith.divf %229, %cst_86 : f32
    %231 = vector.broadcast %230 : f32 to vector<8x128xf32>
    %232 = arith.subf %225, %231 : vector<8x128xf32>
    %233 = arith.mulf %232, %232 : vector<8x128xf32>
    %234 = vector.shape_cast %233 : vector<8x128xf32> to vector<1x8x128xf32>
    %cst_87 = arith.constant dense<0.000000e+00> : vector<1xf32>
    %235 = vector.multi_reduction <add>, %234, %cst_87 [1, 2] : vector<1x8x128xf32> to vector<1xf32>
    %236 = vector.shape_cast %235 : vector<1xf32> to vector<1x1x1xf32>
    %237 = vector.extract %236[0, 0, 0] : f32 from vector<1x1x1xf32>
    %cst_88 = arith.constant 1.024000e+03 : f32
    %238 = arith.divf %237, %cst_88 : f32
    %239 = vector.broadcast %230 : f32 to vector<8x128xf32>
    %240 = arith.subf %225, %239 : vector<8x128xf32>
    %cst_89 = arith.constant 9.99999974E-6 : f32
    %241 = arith.addf %238, %cst_89 : f32
    %242 = math.rsqrt %241 : f32
    %243 = vector.broadcast %242 : f32 to vector<8x128xf32>
    %244 = arith.mulf %240, %243 : vector<8x128xf32>
    %c0_90 = arith.constant 0 : index
    %c1_91 = arith.constant 1 : index
    %245 = memref.load %arg13[%c0_90, %c1_91] : memref<1x8xf32, #tpu.memory_space<smem>>
    %246 = vector.broadcast %245 : f32 to vector<8x128xf32>
    %247 = arith.mulf %244, %246 : vector<8x128xf32>
    %c0_92 = arith.constant 0 : index
    %c1_93 = arith.constant 1 : index
    %248 = memref.load %arg14[%c0_92, %c1_93] : memref<1x8xf32, #tpu.memory_space<smem>>
    %249 = vector.broadcast %248 : f32 to vector<8x128xf32>
    %250 = arith.addf %247, %249 : vector<8x128xf32>
    %cst_94 = arith.constant 0.000000e+00 : f32
    %251 = vector.broadcast %cst_94 : f32 to vector<8x128xf32>
    %252 = arith.maximumf %250, %251 : vector<8x128xf32>
    %c2_95 = arith.constant 2 : index
    %c0_96 = arith.constant 0 : index
    %253 = memref.load %arg11[%c2_95, %c0_96] : memref<8x9xf32, #tpu.memory_space<smem>>
    %c2_97 = arith.constant 2 : index
    %c1_98 = arith.constant 1 : index
    %254 = memref.load %arg11[%c2_97, %c1_98] : memref<8x9xf32, #tpu.memory_space<smem>>
    %c2_99 = arith.constant 2 : index
    %c2_100 = arith.constant 2 : index
    %255 = memref.load %arg11[%c2_99, %c2_100] : memref<8x9xf32, #tpu.memory_space<smem>>
    %c2_101 = arith.constant 2 : index
    %c3_102 = arith.constant 3 : index
    %256 = memref.load %arg11[%c2_101, %c3_102] : memref<8x9xf32, #tpu.memory_space<smem>>
    %c2_103 = arith.constant 2 : index
    %c4_104 = arith.constant 4 : index
    %257 = memref.load %arg11[%c2_103, %c4_104] : memref<8x9xf32, #tpu.memory_space<smem>>
    %c2_105 = arith.constant 2 : index
    %c5_106 = arith.constant 5 : index
    %258 = memref.load %arg11[%c2_105, %c5_106] : memref<8x9xf32, #tpu.memory_space<smem>>
    %c2_107 = arith.constant 2 : index
    %c6_108 = arith.constant 6 : index
    %259 = memref.load %arg11[%c2_107, %c6_108] : memref<8x9xf32, #tpu.memory_space<smem>>
    %c2_109 = arith.constant 2 : index
    %c7_110 = arith.constant 7 : index
    %260 = memref.load %arg11[%c2_109, %c7_110] : memref<8x9xf32, #tpu.memory_space<smem>>
    %c2_111 = arith.constant 2 : index
    %c8_112 = arith.constant 8 : index
    %261 = memref.load %arg11[%c2_111, %c8_112] : memref<8x9xf32, #tpu.memory_space<smem>>
    %262 = vector.broadcast %253 : f32 to vector<8x128xf32>
    %263 = arith.mulf %39, %262 : vector<8x128xf32>
    %264 = vector.broadcast %254 : f32 to vector<8x128xf32>
    %265 = arith.mulf %43, %264 : vector<8x128xf32>
    %266 = vector.broadcast %255 : f32 to vector<8x128xf32>
    %267 = arith.mulf %48, %266 : vector<8x128xf32>
    %268 = vector.broadcast %256 : f32 to vector<8x128xf32>
    %269 = arith.mulf %76, %268 : vector<8x128xf32>
    %270 = vector.broadcast %257 : f32 to vector<8x128xf32>
    %271 = arith.mulf %80, %270 : vector<8x128xf32>
    %272 = vector.broadcast %258 : f32 to vector<8x128xf32>
    %273 = arith.mulf %85, %272 : vector<8x128xf32>
    %274 = vector.broadcast %259 : f32 to vector<8x128xf32>
    %275 = arith.mulf %113, %274 : vector<8x128xf32>
    %276 = vector.broadcast %260 : f32 to vector<8x128xf32>
    %277 = arith.mulf %117, %276 : vector<8x128xf32>
    %278 = vector.broadcast %261 : f32 to vector<8x128xf32>
    %279 = arith.mulf %122, %278 : vector<8x128xf32>
    %280 = arith.addf %263, %265 : vector<8x128xf32>
    %281 = arith.addf %267, %269 : vector<8x128xf32>
    %282 = arith.addf %271, %273 : vector<8x128xf32>
    %283 = arith.addf %275, %277 : vector<8x128xf32>
    %284 = arith.addf %280, %281 : vector<8x128xf32>
    %285 = arith.addf %282, %283 : vector<8x128xf32>
    %286 = arith.addf %284, %285 : vector<8x128xf32>
    %287 = arith.addf %286, %279 : vector<8x128xf32>
    %c0_113 = arith.constant 0 : index
    %c2_114 = arith.constant 2 : index
    %288 = memref.load %arg12[%c0_113, %c2_114] : memref<1x8xf32, #tpu.memory_space<smem>>
    %289 = vector.broadcast %288 : f32 to vector<8x128xf32>
    %290 = arith.addf %287, %289 : vector<8x128xf32>
    %291 = vector.shape_cast %290 : vector<8x128xf32> to vector<1x8x128xf32>
    %cst_115 = arith.constant dense<0.000000e+00> : vector<1xf32>
    %292 = vector.multi_reduction <add>, %291, %cst_115 [1, 2] : vector<1x8x128xf32> to vector<1xf32>
    %293 = vector.shape_cast %292 : vector<1xf32> to vector<1x1x1xf32>
    %294 = vector.extract %293[0, 0, 0] : f32 from vector<1x1x1xf32>
    %cst_116 = arith.constant 1.024000e+03 : f32
    %295 = arith.divf %294, %cst_116 : f32
    %296 = vector.broadcast %295 : f32 to vector<8x128xf32>
    %297 = arith.subf %290, %296 : vector<8x128xf32>
    %298 = arith.mulf %297, %297 : vector<8x128xf32>
    %299 = vector.shape_cast %298 : vector<8x128xf32> to vector<1x8x128xf32>
    %cst_117 = arith.constant dense<0.000000e+00> : vector<1xf32>
    %300 = vector.multi_reduction <add>, %299, %cst_117 [1, 2] : vector<1x8x128xf32> to vector<1xf32>
    %301 = vector.shape_cast %300 : vector<1xf32> to vector<1x1x1xf32>
    %302 = vector.extract %301[0, 0, 0] : f32 from vector<1x1x1xf32>
    %cst_118 = arith.constant 1.024000e+03 : f32
    %303 = arith.divf %302, %cst_118 : f32
    %304 = vector.broadcast %295 : f32 to vector<8x128xf32>
    %305 = arith.subf %290, %304 : vector<8x128xf32>
    %cst_119 = arith.constant 9.99999974E-6 : f32
    %306 = arith.addf %303, %cst_119 : f32
    %307 = math.rsqrt %306 : f32
    %308 = vector.broadcast %307 : f32 to vector<8x128xf32>
    %309 = arith.mulf %305, %308 : vector<8x128xf32>
    %c0_120 = arith.constant 0 : index
    %c2_121 = arith.constant 2 : index
    %310 = memref.load %arg13[%c0_120, %c2_121] : memref<1x8xf32, #tpu.memory_space<smem>>
    %311 = vector.broadcast %310 : f32 to vector<8x128xf32>
    %312 = arith.mulf %309, %311 : vector<8x128xf32>
    %c0_122 = arith.constant 0 : index
    %c2_123 = arith.constant 2 : index
    %313 = memref.load %arg14[%c0_122, %c2_123] : memref<1x8xf32, #tpu.memory_space<smem>>
    %314 = vector.broadcast %313 : f32 to vector<8x128xf32>
    %315 = arith.addf %312, %314 : vector<8x128xf32>
    %cst_124 = arith.constant 0.000000e+00 : f32
    %316 = vector.broadcast %cst_124 : f32 to vector<8x128xf32>
    %317 = arith.maximumf %315, %316 : vector<8x128xf32>
    %c3_125 = arith.constant 3 : index
    %c0_126 = arith.constant 0 : index
    %318 = memref.load %arg11[%c3_125, %c0_126] : memref<8x9xf32, #tpu.memory_space<smem>>
    %c3_127 = arith.constant 3 : index
    %c1_128 = arith.constant 1 : index
    %319 = memref.load %arg11[%c3_127, %c1_128] : memref<8x9xf32, #tpu.memory_space<smem>>
    %c3_129 = arith.constant 3 : index
    %c2_130 = arith.constant 2 : index
    %320 = memref.load %arg11[%c3_129, %c2_130] : memref<8x9xf32, #tpu.memory_space<smem>>
    %c3_131 = arith.constant 3 : index
    %c3_132 = arith.constant 3 : index
    %321 = memref.load %arg11[%c3_131, %c3_132] : memref<8x9xf32, #tpu.memory_space<smem>>
    %c3_133 = arith.constant 3 : index
    %c4_134 = arith.constant 4 : index
    %322 = memref.load %arg11[%c3_133, %c4_134] : memref<8x9xf32, #tpu.memory_space<smem>>
    %c3_135 = arith.constant 3 : index
    %c5_136 = arith.constant 5 : index
    %323 = memref.load %arg11[%c3_135, %c5_136] : memref<8x9xf32, #tpu.memory_space<smem>>
    %c3_137 = arith.constant 3 : index
    %c6_138 = arith.constant 6 : index
    %324 = memref.load %arg11[%c3_137, %c6_138] : memref<8x9xf32, #tpu.memory_space<smem>>
    %c3_139 = arith.constant 3 : index
    %c7_140 = arith.constant 7 : index
    %325 = memref.load %arg11[%c3_139, %c7_140] : memref<8x9xf32, #tpu.memory_space<smem>>
    %c3_141 = arith.constant 3 : index
    %c8_142 = arith.constant 8 : index
    %326 = memref.load %arg11[%c3_141, %c8_142] : memref<8x9xf32, #tpu.memory_space<smem>>
    %327 = vector.broadcast %318 : f32 to vector<8x128xf32>
    %328 = arith.mulf %39, %327 : vector<8x128xf32>
    %329 = vector.broadcast %319 : f32 to vector<8x128xf32>
    %330 = arith.mulf %43, %329 : vector<8x128xf32>
    %331 = vector.broadcast %320 : f32 to vector<8x128xf32>
    %332 = arith.mulf %48, %331 : vector<8x128xf32>
    %333 = vector.broadcast %321 : f32 to vector<8x128xf32>
    %334 = arith.mulf %76, %333 : vector<8x128xf32>
    %335 = vector.broadcast %322 : f32 to vector<8x128xf32>
    %336 = arith.mulf %80, %335 : vector<8x128xf32>
    %337 = vector.broadcast %323 : f32 to vector<8x128xf32>
    %338 = arith.mulf %85, %337 : vector<8x128xf32>
    %339 = vector.broadcast %324 : f32 to vector<8x128xf32>
    %340 = arith.mulf %113, %339 : vector<8x128xf32>
    %341 = vector.broadcast %325 : f32 to vector<8x128xf32>
    %342 = arith.mulf %117, %341 : vector<8x128xf32>
    %343 = vector.broadcast %326 : f32 to vector<8x128xf32>
    %344 = arith.mulf %122, %343 : vector<8x128xf32>
    %345 = arith.addf %328, %330 : vector<8x128xf32>
    %346 = arith.addf %332, %334 : vector<8x128xf32>
    %347 = arith.addf %336, %338 : vector<8x128xf32>
    %348 = arith.addf %340, %342 : vector<8x128xf32>
    %349 = arith.addf %345, %346 : vector<8x128xf32>
    %350 = arith.addf %347, %348 : vector<8x128xf32>
    %351 = arith.addf %349, %350 : vector<8x128xf32>
    %352 = arith.addf %351, %344 : vector<8x128xf32>
    %c0_143 = arith.constant 0 : index
    %c3_144 = arith.constant 3 : index
    %353 = memref.load %arg12[%c0_143, %c3_144] : memref<1x8xf32, #tpu.memory_space<smem>>
    %354 = vector.broadcast %353 : f32 to vector<8x128xf32>
    %355 = arith.addf %352, %354 : vector<8x128xf32>
    %356 = vector.shape_cast %355 : vector<8x128xf32> to vector<1x8x128xf32>
    %cst_145 = arith.constant dense<0.000000e+00> : vector<1xf32>
    %357 = vector.multi_reduction <add>, %356, %cst_145 [1, 2] : vector<1x8x128xf32> to vector<1xf32>
    %358 = vector.shape_cast %357 : vector<1xf32> to vector<1x1x1xf32>
    %359 = vector.extract %358[0, 0, 0] : f32 from vector<1x1x1xf32>
    %cst_146 = arith.constant 1.024000e+03 : f32
    %360 = arith.divf %359, %cst_146 : f32
    %361 = vector.broadcast %360 : f32 to vector<8x128xf32>
    %362 = arith.subf %355, %361 : vector<8x128xf32>
    %363 = arith.mulf %362, %362 : vector<8x128xf32>
    %364 = vector.shape_cast %363 : vector<8x128xf32> to vector<1x8x128xf32>
    %cst_147 = arith.constant dense<0.000000e+00> : vector<1xf32>
    %365 = vector.multi_reduction <add>, %364, %cst_147 [1, 2] : vector<1x8x128xf32> to vector<1xf32>
    %366 = vector.shape_cast %365 : vector<1xf32> to vector<1x1x1xf32>
    %367 = vector.extract %366[0, 0, 0] : f32 from vector<1x1x1xf32>
    %cst_148 = arith.constant 1.024000e+03 : f32
    %368 = arith.divf %367, %cst_148 : f32
    %369 = vector.broadcast %360 : f32 to vector<8x128xf32>
    %370 = arith.subf %355, %369 : vector<8x128xf32>
    %cst_149 = arith.constant 9.99999974E-6 : f32
    %371 = arith.addf %368, %cst_149 : f32
    %372 = math.rsqrt %371 : f32
    %373 = vector.broadcast %372 : f32 to vector<8x128xf32>
    %374 = arith.mulf %370, %373 : vector<8x128xf32>
    %c0_150 = arith.constant 0 : index
    %c3_151 = arith.constant 3 : index
    %375 = memref.load %arg13[%c0_150, %c3_151] : memref<1x8xf32, #tpu.memory_space<smem>>
    %376 = vector.broadcast %375 : f32 to vector<8x128xf32>
    %377 = arith.mulf %374, %376 : vector<8x128xf32>
    %c0_152 = arith.constant 0 : index
    %c3_153 = arith.constant 3 : index
    %378 = memref.load %arg14[%c0_152, %c3_153] : memref<1x8xf32, #tpu.memory_space<smem>>
    %379 = vector.broadcast %378 : f32 to vector<8x128xf32>
    %380 = arith.addf %377, %379 : vector<8x128xf32>
    %cst_154 = arith.constant 0.000000e+00 : f32
    %381 = vector.broadcast %cst_154 : f32 to vector<8x128xf32>
    %382 = arith.maximumf %380, %381 : vector<8x128xf32>
    %c4_155 = arith.constant 4 : index
    %c0_156 = arith.constant 0 : index
    %383 = memref.load %arg11[%c4_155, %c0_156] : memref<8x9xf32, #tpu.memory_space<smem>>
    %c4_157 = arith.constant 4 : index
    %c1_158 = arith.constant 1 : index
    %384 = memref.load %arg11[%c4_157, %c1_158] : memref<8x9xf32, #tpu.memory_space<smem>>
    %c4_159 = arith.constant 4 : index
    %c2_160 = arith.constant 2 : index
    %385 = memref.load %arg11[%c4_159, %c2_160] : memref<8x9xf32, #tpu.memory_space<smem>>
    %c4_161 = arith.constant 4 : index
    %c3_162 = arith.constant 3 : index
    %386 = memref.load %arg11[%c4_161, %c3_162] : memref<8x9xf32, #tpu.memory_space<smem>>
    %c4_163 = arith.constant 4 : index
    %c4_164 = arith.constant 4 : index
    %387 = memref.load %arg11[%c4_163, %c4_164] : memref<8x9xf32, #tpu.memory_space<smem>>
    %c4_165 = arith.constant 4 : index
    %c5_166 = arith.constant 5 : index
    %388 = memref.load %arg11[%c4_165, %c5_166] : memref<8x9xf32, #tpu.memory_space<smem>>
    %c4_167 = arith.constant 4 : index
    %c6_168 = arith.constant 6 : index
    %389 = memref.load %arg11[%c4_167, %c6_168] : memref<8x9xf32, #tpu.memory_space<smem>>
    %c4_169 = arith.constant 4 : index
    %c7_170 = arith.constant 7 : index
    %390 = memref.load %arg11[%c4_169, %c7_170] : memref<8x9xf32, #tpu.memory_space<smem>>
    %c4_171 = arith.constant 4 : index
    %c8_172 = arith.constant 8 : index
    %391 = memref.load %arg11[%c4_171, %c8_172] : memref<8x9xf32, #tpu.memory_space<smem>>
    %392 = vector.broadcast %383 : f32 to vector<8x128xf32>
    %393 = arith.mulf %39, %392 : vector<8x128xf32>
    %394 = vector.broadcast %384 : f32 to vector<8x128xf32>
    %395 = arith.mulf %43, %394 : vector<8x128xf32>
    %396 = vector.broadcast %385 : f32 to vector<8x128xf32>
    %397 = arith.mulf %48, %396 : vector<8x128xf32>
    %398 = vector.broadcast %386 : f32 to vector<8x128xf32>
    %399 = arith.mulf %76, %398 : vector<8x128xf32>
    %400 = vector.broadcast %387 : f32 to vector<8x128xf32>
    %401 = arith.mulf %80, %400 : vector<8x128xf32>
    %402 = vector.broadcast %388 : f32 to vector<8x128xf32>
    %403 = arith.mulf %85, %402 : vector<8x128xf32>
    %404 = vector.broadcast %389 : f32 to vector<8x128xf32>
    %405 = arith.mulf %113, %404 : vector<8x128xf32>
    %406 = vector.broadcast %390 : f32 to vector<8x128xf32>
    %407 = arith.mulf %117, %406 : vector<8x128xf32>
    %408 = vector.broadcast %391 : f32 to vector<8x128xf32>
    %409 = arith.mulf %122, %408 : vector<8x128xf32>
    %410 = arith.addf %393, %395 : vector<8x128xf32>
    %411 = arith.addf %397, %399 : vector<8x128xf32>
    %412 = arith.addf %401, %403 : vector<8x128xf32>
    %413 = arith.addf %405, %407 : vector<8x128xf32>
    %414 = arith.addf %410, %411 : vector<8x128xf32>
    %415 = arith.addf %412, %413 : vector<8x128xf32>
    %416 = arith.addf %414, %415 : vector<8x128xf32>
    %417 = arith.addf %416, %409 : vector<8x128xf32>
    %c0_173 = arith.constant 0 : index
    %c4_174 = arith.constant 4 : index
    %418 = memref.load %arg12[%c0_173, %c4_174] : memref<1x8xf32, #tpu.memory_space<smem>>
    %419 = vector.broadcast %418 : f32 to vector<8x128xf32>
    %420 = arith.addf %417, %419 : vector<8x128xf32>
    %421 = vector.shape_cast %420 : vector<8x128xf32> to vector<1x8x128xf32>
    %cst_175 = arith.constant dense<0.000000e+00> : vector<1xf32>
    %422 = vector.multi_reduction <add>, %421, %cst_175 [1, 2] : vector<1x8x128xf32> to vector<1xf32>
    %423 = vector.shape_cast %422 : vector<1xf32> to vector<1x1x1xf32>
    %424 = vector.extract %423[0, 0, 0] : f32 from vector<1x1x1xf32>
    %cst_176 = arith.constant 1.024000e+03 : f32
    %425 = arith.divf %424, %cst_176 : f32
    %426 = vector.broadcast %425 : f32 to vector<8x128xf32>
    %427 = arith.subf %420, %426 : vector<8x128xf32>
    %428 = arith.mulf %427, %427 : vector<8x128xf32>
    %429 = vector.shape_cast %428 : vector<8x128xf32> to vector<1x8x128xf32>
    %cst_177 = arith.constant dense<0.000000e+00> : vector<1xf32>
    %430 = vector.multi_reduction <add>, %429, %cst_177 [1, 2] : vector<1x8x128xf32> to vector<1xf32>
    %431 = vector.shape_cast %430 : vector<1xf32> to vector<1x1x1xf32>
    %432 = vector.extract %431[0, 0, 0] : f32 from vector<1x1x1xf32>
    %cst_178 = arith.constant 1.024000e+03 : f32
    %433 = arith.divf %432, %cst_178 : f32
    %434 = vector.broadcast %425 : f32 to vector<8x128xf32>
    %435 = arith.subf %420, %434 : vector<8x128xf32>
    %cst_179 = arith.constant 9.99999974E-6 : f32
    %436 = arith.addf %433, %cst_179 : f32
    %437 = math.rsqrt %436 : f32
    %438 = vector.broadcast %437 : f32 to vector<8x128xf32>
    %439 = arith.mulf %435, %438 : vector<8x128xf32>
    %c0_180 = arith.constant 0 : index
    %c4_181 = arith.constant 4 : index
    %440 = memref.load %arg13[%c0_180, %c4_181] : memref<1x8xf32, #tpu.memory_space<smem>>
    %441 = vector.broadcast %440 : f32 to vector<8x128xf32>
    %442 = arith.mulf %439, %441 : vector<8x128xf32>
    %c0_182 = arith.constant 0 : index
    %c4_183 = arith.constant 4 : index
    %443 = memref.load %arg14[%c0_182, %c4_183] : memref<1x8xf32, #tpu.memory_space<smem>>
    %444 = vector.broadcast %443 : f32 to vector<8x128xf32>
    %445 = arith.addf %442, %444 : vector<8x128xf32>
    %cst_184 = arith.constant 0.000000e+00 : f32
    %446 = vector.broadcast %cst_184 : f32 to vector<8x128xf32>
    %447 = arith.maximumf %445, %446 : vector<8x128xf32>
    %c5_185 = arith.constant 5 : index
    %c0_186 = arith.constant 0 : index
    %448 = memref.load %arg11[%c5_185, %c0_186] : memref<8x9xf32, #tpu.memory_space<smem>>
    %c5_187 = arith.constant 5 : index
    %c1_188 = arith.constant 1 : index
    %449 = memref.load %arg11[%c5_187, %c1_188] : memref<8x9xf32, #tpu.memory_space<smem>>
    %c5_189 = arith.constant 5 : index
    %c2_190 = arith.constant 2 : index
    %450 = memref.load %arg11[%c5_189, %c2_190] : memref<8x9xf32, #tpu.memory_space<smem>>
    %c5_191 = arith.constant 5 : index
    %c3_192 = arith.constant 3 : index
    %451 = memref.load %arg11[%c5_191, %c3_192] : memref<8x9xf32, #tpu.memory_space<smem>>
    %c5_193 = arith.constant 5 : index
    %c4_194 = arith.constant 4 : index
    %452 = memref.load %arg11[%c5_193, %c4_194] : memref<8x9xf32, #tpu.memory_space<smem>>
    %c5_195 = arith.constant 5 : index
    %c5_196 = arith.constant 5 : index
    %453 = memref.load %arg11[%c5_195, %c5_196] : memref<8x9xf32, #tpu.memory_space<smem>>
    %c5_197 = arith.constant 5 : index
    %c6_198 = arith.constant 6 : index
    %454 = memref.load %arg11[%c5_197, %c6_198] : memref<8x9xf32, #tpu.memory_space<smem>>
    %c5_199 = arith.constant 5 : index
    %c7_200 = arith.constant 7 : index
    %455 = memref.load %arg11[%c5_199, %c7_200] : memref<8x9xf32, #tpu.memory_space<smem>>
    %c5_201 = arith.constant 5 : index
    %c8_202 = arith.constant 8 : index
    %456 = memref.load %arg11[%c5_201, %c8_202] : memref<8x9xf32, #tpu.memory_space<smem>>
    %457 = vector.broadcast %448 : f32 to vector<8x128xf32>
    %458 = arith.mulf %39, %457 : vector<8x128xf32>
    %459 = vector.broadcast %449 : f32 to vector<8x128xf32>
    %460 = arith.mulf %43, %459 : vector<8x128xf32>
    %461 = vector.broadcast %450 : f32 to vector<8x128xf32>
    %462 = arith.mulf %48, %461 : vector<8x128xf32>
    %463 = vector.broadcast %451 : f32 to vector<8x128xf32>
    %464 = arith.mulf %76, %463 : vector<8x128xf32>
    %465 = vector.broadcast %452 : f32 to vector<8x128xf32>
    %466 = arith.mulf %80, %465 : vector<8x128xf32>
    %467 = vector.broadcast %453 : f32 to vector<8x128xf32>
    %468 = arith.mulf %85, %467 : vector<8x128xf32>
    %469 = vector.broadcast %454 : f32 to vector<8x128xf32>
    %470 = arith.mulf %113, %469 : vector<8x128xf32>
    %471 = vector.broadcast %455 : f32 to vector<8x128xf32>
    %472 = arith.mulf %117, %471 : vector<8x128xf32>
    %473 = vector.broadcast %456 : f32 to vector<8x128xf32>
    %474 = arith.mulf %122, %473 : vector<8x128xf32>
    %475 = arith.addf %458, %460 : vector<8x128xf32>
    %476 = arith.addf %462, %464 : vector<8x128xf32>
    %477 = arith.addf %466, %468 : vector<8x128xf32>
    %478 = arith.addf %470, %472 : vector<8x128xf32>
    %479 = arith.addf %475, %476 : vector<8x128xf32>
    %480 = arith.addf %477, %478 : vector<8x128xf32>
    %481 = arith.addf %479, %480 : vector<8x128xf32>
    %482 = arith.addf %481, %474 : vector<8x128xf32>
    %c0_203 = arith.constant 0 : index
    %c5_204 = arith.constant 5 : index
    %483 = memref.load %arg12[%c0_203, %c5_204] : memref<1x8xf32, #tpu.memory_space<smem>>
    %484 = vector.broadcast %483 : f32 to vector<8x128xf32>
    %485 = arith.addf %482, %484 : vector<8x128xf32>
    %486 = vector.shape_cast %485 : vector<8x128xf32> to vector<1x8x128xf32>
    %cst_205 = arith.constant dense<0.000000e+00> : vector<1xf32>
    %487 = vector.multi_reduction <add>, %486, %cst_205 [1, 2] : vector<1x8x128xf32> to vector<1xf32>
    %488 = vector.shape_cast %487 : vector<1xf32> to vector<1x1x1xf32>
    %489 = vector.extract %488[0, 0, 0] : f32 from vector<1x1x1xf32>
    %cst_206 = arith.constant 1.024000e+03 : f32
    %490 = arith.divf %489, %cst_206 : f32
    %491 = vector.broadcast %490 : f32 to vector<8x128xf32>
    %492 = arith.subf %485, %491 : vector<8x128xf32>
    %493 = arith.mulf %492, %492 : vector<8x128xf32>
    %494 = vector.shape_cast %493 : vector<8x128xf32> to vector<1x8x128xf32>
    %cst_207 = arith.constant dense<0.000000e+00> : vector<1xf32>
    %495 = vector.multi_reduction <add>, %494, %cst_207 [1, 2] : vector<1x8x128xf32> to vector<1xf32>
    %496 = vector.shape_cast %495 : vector<1xf32> to vector<1x1x1xf32>
    %497 = vector.extract %496[0, 0, 0] : f32 from vector<1x1x1xf32>
    %cst_208 = arith.constant 1.024000e+03 : f32
    %498 = arith.divf %497, %cst_208 : f32
    %499 = vector.broadcast %490 : f32 to vector<8x128xf32>
    %500 = arith.subf %485, %499 : vector<8x128xf32>
    %cst_209 = arith.constant 9.99999974E-6 : f32
    %501 = arith.addf %498, %cst_209 : f32
    %502 = math.rsqrt %501 : f32
    %503 = vector.broadcast %502 : f32 to vector<8x128xf32>
    %504 = arith.mulf %500, %503 : vector<8x128xf32>
    %c0_210 = arith.constant 0 : index
    %c5_211 = arith.constant 5 : index
    %505 = memref.load %arg13[%c0_210, %c5_211] : memref<1x8xf32, #tpu.memory_space<smem>>
    %506 = vector.broadcast %505 : f32 to vector<8x128xf32>
    %507 = arith.mulf %504, %506 : vector<8x128xf32>
    %c0_212 = arith.constant 0 : index
    %c5_213 = arith.constant 5 : index
    %508 = memref.load %arg14[%c0_212, %c5_213] : memref<1x8xf32, #tpu.memory_space<smem>>
    %509 = vector.broadcast %508 : f32 to vector<8x128xf32>
    %510 = arith.addf %507, %509 : vector<8x128xf32>
    %cst_214 = arith.constant 0.000000e+00 : f32
    %511 = vector.broadcast %cst_214 : f32 to vector<8x128xf32>
    %512 = arith.maximumf %510, %511 : vector<8x128xf32>
    %c6_215 = arith.constant 6 : index
    %c0_216 = arith.constant 0 : index
    %513 = memref.load %arg11[%c6_215, %c0_216] : memref<8x9xf32, #tpu.memory_space<smem>>
    %c6_217 = arith.constant 6 : index
    %c1_218 = arith.constant 1 : index
    %514 = memref.load %arg11[%c6_217, %c1_218] : memref<8x9xf32, #tpu.memory_space<smem>>
    %c6_219 = arith.constant 6 : index
    %c2_220 = arith.constant 2 : index
    %515 = memref.load %arg11[%c6_219, %c2_220] : memref<8x9xf32, #tpu.memory_space<smem>>
    %c6_221 = arith.constant 6 : index
    %c3_222 = arith.constant 3 : index
    %516 = memref.load %arg11[%c6_221, %c3_222] : memref<8x9xf32, #tpu.memory_space<smem>>
    %c6_223 = arith.constant 6 : index
    %c4_224 = arith.constant 4 : index
    %517 = memref.load %arg11[%c6_223, %c4_224] : memref<8x9xf32, #tpu.memory_space<smem>>
    %c6_225 = arith.constant 6 : index
    %c5_226 = arith.constant 5 : index
    %518 = memref.load %arg11[%c6_225, %c5_226] : memref<8x9xf32, #tpu.memory_space<smem>>
    %c6_227 = arith.constant 6 : index
    %c6_228 = arith.constant 6 : index
    %519 = memref.load %arg11[%c6_227, %c6_228] : memref<8x9xf32, #tpu.memory_space<smem>>
    %c6_229 = arith.constant 6 : index
    %c7_230 = arith.constant 7 : index
    %520 = memref.load %arg11[%c6_229, %c7_230] : memref<8x9xf32, #tpu.memory_space<smem>>
    %c6_231 = arith.constant 6 : index
    %c8_232 = arith.constant 8 : index
    %521 = memref.load %arg11[%c6_231, %c8_232] : memref<8x9xf32, #tpu.memory_space<smem>>
    %522 = vector.broadcast %513 : f32 to vector<8x128xf32>
    %523 = arith.mulf %39, %522 : vector<8x128xf32>
    %524 = vector.broadcast %514 : f32 to vector<8x128xf32>
    %525 = arith.mulf %43, %524 : vector<8x128xf32>
    %526 = vector.broadcast %515 : f32 to vector<8x128xf32>
    %527 = arith.mulf %48, %526 : vector<8x128xf32>
    %528 = vector.broadcast %516 : f32 to vector<8x128xf32>
    %529 = arith.mulf %76, %528 : vector<8x128xf32>
    %530 = vector.broadcast %517 : f32 to vector<8x128xf32>
    %531 = arith.mulf %80, %530 : vector<8x128xf32>
    %532 = vector.broadcast %518 : f32 to vector<8x128xf32>
    %533 = arith.mulf %85, %532 : vector<8x128xf32>
    %534 = vector.broadcast %519 : f32 to vector<8x128xf32>
    %535 = arith.mulf %113, %534 : vector<8x128xf32>
    %536 = vector.broadcast %520 : f32 to vector<8x128xf32>
    %537 = arith.mulf %117, %536 : vector<8x128xf32>
    %538 = vector.broadcast %521 : f32 to vector<8x128xf32>
    %539 = arith.mulf %122, %538 : vector<8x128xf32>
    %540 = arith.addf %523, %525 : vector<8x128xf32>
    %541 = arith.addf %527, %529 : vector<8x128xf32>
    %542 = arith.addf %531, %533 : vector<8x128xf32>
    %543 = arith.addf %535, %537 : vector<8x128xf32>
    %544 = arith.addf %540, %541 : vector<8x128xf32>
    %545 = arith.addf %542, %543 : vector<8x128xf32>
    %546 = arith.addf %544, %545 : vector<8x128xf32>
    %547 = arith.addf %546, %539 : vector<8x128xf32>
    %c0_233 = arith.constant 0 : index
    %c6_234 = arith.constant 6 : index
    %548 = memref.load %arg12[%c0_233, %c6_234] : memref<1x8xf32, #tpu.memory_space<smem>>
    %549 = vector.broadcast %548 : f32 to vector<8x128xf32>
    %550 = arith.addf %547, %549 : vector<8x128xf32>
    %551 = vector.shape_cast %550 : vector<8x128xf32> to vector<1x8x128xf32>
    %cst_235 = arith.constant dense<0.000000e+00> : vector<1xf32>
    %552 = vector.multi_reduction <add>, %551, %cst_235 [1, 2] : vector<1x8x128xf32> to vector<1xf32>
    %553 = vector.shape_cast %552 : vector<1xf32> to vector<1x1x1xf32>
    %554 = vector.extract %553[0, 0, 0] : f32 from vector<1x1x1xf32>
    %cst_236 = arith.constant 1.024000e+03 : f32
    %555 = arith.divf %554, %cst_236 : f32
    %556 = vector.broadcast %555 : f32 to vector<8x128xf32>
    %557 = arith.subf %550, %556 : vector<8x128xf32>
    %558 = arith.mulf %557, %557 : vector<8x128xf32>
    %559 = vector.shape_cast %558 : vector<8x128xf32> to vector<1x8x128xf32>
    %cst_237 = arith.constant dense<0.000000e+00> : vector<1xf32>
    %560 = vector.multi_reduction <add>, %559, %cst_237 [1, 2] : vector<1x8x128xf32> to vector<1xf32>
    %561 = vector.shape_cast %560 : vector<1xf32> to vector<1x1x1xf32>
    %562 = vector.extract %561[0, 0, 0] : f32 from vector<1x1x1xf32>
    %cst_238 = arith.constant 1.024000e+03 : f32
    %563 = arith.divf %562, %cst_238 : f32
    %564 = vector.broadcast %555 : f32 to vector<8x128xf32>
    %565 = arith.subf %550, %564 : vector<8x128xf32>
    %cst_239 = arith.constant 9.99999974E-6 : f32
    %566 = arith.addf %563, %cst_239 : f32
    %567 = math.rsqrt %566 : f32
    %568 = vector.broadcast %567 : f32 to vector<8x128xf32>
    %569 = arith.mulf %565, %568 : vector<8x128xf32>
    %c0_240 = arith.constant 0 : index
    %c6_241 = arith.constant 6 : index
    %570 = memref.load %arg13[%c0_240, %c6_241] : memref<1x8xf32, #tpu.memory_space<smem>>
    %571 = vector.broadcast %570 : f32 to vector<8x128xf32>
    %572 = arith.mulf %569, %571 : vector<8x128xf32>
    %c0_242 = arith.constant 0 : index
    %c6_243 = arith.constant 6 : index
    %573 = memref.load %arg14[%c0_242, %c6_243] : memref<1x8xf32, #tpu.memory_space<smem>>
    %574 = vector.broadcast %573 : f32 to vector<8x128xf32>
    %575 = arith.addf %572, %574 : vector<8x128xf32>
    %cst_244 = arith.constant 0.000000e+00 : f32
    %576 = vector.broadcast %cst_244 : f32 to vector<8x128xf32>
    %577 = arith.maximumf %575, %576 : vector<8x128xf32>
    %c7_245 = arith.constant 7 : index
    %c0_246 = arith.constant 0 : index
    %578 = memref.load %arg11[%c7_245, %c0_246] : memref<8x9xf32, #tpu.memory_space<smem>>
    %c7_247 = arith.constant 7 : index
    %c1_248 = arith.constant 1 : index
    %579 = memref.load %arg11[%c7_247, %c1_248] : memref<8x9xf32, #tpu.memory_space<smem>>
    %c7_249 = arith.constant 7 : index
    %c2_250 = arith.constant 2 : index
    %580 = memref.load %arg11[%c7_249, %c2_250] : memref<8x9xf32, #tpu.memory_space<smem>>
    %c7_251 = arith.constant 7 : index
    %c3_252 = arith.constant 3 : index
    %581 = memref.load %arg11[%c7_251, %c3_252] : memref<8x9xf32, #tpu.memory_space<smem>>
    %c7_253 = arith.constant 7 : index
    %c4_254 = arith.constant 4 : index
    %582 = memref.load %arg11[%c7_253, %c4_254] : memref<8x9xf32, #tpu.memory_space<smem>>
    %c7_255 = arith.constant 7 : index
    %c5_256 = arith.constant 5 : index
    %583 = memref.load %arg11[%c7_255, %c5_256] : memref<8x9xf32, #tpu.memory_space<smem>>
    %c7_257 = arith.constant 7 : index
    %c6_258 = arith.constant 6 : index
    %584 = memref.load %arg11[%c7_257, %c6_258] : memref<8x9xf32, #tpu.memory_space<smem>>
    %c7_259 = arith.constant 7 : index
    %c7_260 = arith.constant 7 : index
    %585 = memref.load %arg11[%c7_259, %c7_260] : memref<8x9xf32, #tpu.memory_space<smem>>
    %c7_261 = arith.constant 7 : index
    %c8_262 = arith.constant 8 : index
    %586 = memref.load %arg11[%c7_261, %c8_262] : memref<8x9xf32, #tpu.memory_space<smem>>
    %587 = vector.broadcast %578 : f32 to vector<8x128xf32>
    %588 = arith.mulf %39, %587 : vector<8x128xf32>
    %589 = vector.broadcast %579 : f32 to vector<8x128xf32>
    %590 = arith.mulf %43, %589 : vector<8x128xf32>
    %591 = vector.broadcast %580 : f32 to vector<8x128xf32>
    %592 = arith.mulf %48, %591 : vector<8x128xf32>
    %593 = vector.broadcast %581 : f32 to vector<8x128xf32>
    %594 = arith.mulf %76, %593 : vector<8x128xf32>
    %595 = vector.broadcast %582 : f32 to vector<8x128xf32>
    %596 = arith.mulf %80, %595 : vector<8x128xf32>
    %597 = vector.broadcast %583 : f32 to vector<8x128xf32>
    %598 = arith.mulf %85, %597 : vector<8x128xf32>
    %599 = vector.broadcast %584 : f32 to vector<8x128xf32>
    %600 = arith.mulf %113, %599 : vector<8x128xf32>
    %601 = vector.broadcast %585 : f32 to vector<8x128xf32>
    %602 = arith.mulf %117, %601 : vector<8x128xf32>
    %603 = vector.broadcast %586 : f32 to vector<8x128xf32>
    %604 = arith.mulf %122, %603 : vector<8x128xf32>
    %605 = arith.addf %588, %590 : vector<8x128xf32>
    %606 = arith.addf %592, %594 : vector<8x128xf32>
    %607 = arith.addf %596, %598 : vector<8x128xf32>
    %608 = arith.addf %600, %602 : vector<8x128xf32>
    %609 = arith.addf %605, %606 : vector<8x128xf32>
    %610 = arith.addf %607, %608 : vector<8x128xf32>
    %611 = arith.addf %609, %610 : vector<8x128xf32>
    %612 = arith.addf %611, %604 : vector<8x128xf32>
    %c0_263 = arith.constant 0 : index
    %c7_264 = arith.constant 7 : index
    %613 = memref.load %arg12[%c0_263, %c7_264] : memref<1x8xf32, #tpu.memory_space<smem>>
    %614 = vector.broadcast %613 : f32 to vector<8x128xf32>
    %615 = arith.addf %612, %614 : vector<8x128xf32>
    %616 = vector.shape_cast %615 : vector<8x128xf32> to vector<1x8x128xf32>
    %cst_265 = arith.constant dense<0.000000e+00> : vector<1xf32>
    %617 = vector.multi_reduction <add>, %616, %cst_265 [1, 2] : vector<1x8x128xf32> to vector<1xf32>
    %618 = vector.shape_cast %617 : vector<1xf32> to vector<1x1x1xf32>
    %619 = vector.extract %618[0, 0, 0] : f32 from vector<1x1x1xf32>
    %cst_266 = arith.constant 1.024000e+03 : f32
    %620 = arith.divf %619, %cst_266 : f32
    %621 = vector.broadcast %620 : f32 to vector<8x128xf32>
    %622 = arith.subf %615, %621 : vector<8x128xf32>
    %623 = arith.mulf %622, %622 : vector<8x128xf32>
    %624 = vector.shape_cast %623 : vector<8x128xf32> to vector<1x8x128xf32>
    %cst_267 = arith.constant dense<0.000000e+00> : vector<1xf32>
    %625 = vector.multi_reduction <add>, %624, %cst_267 [1, 2] : vector<1x8x128xf32> to vector<1xf32>
    %626 = vector.shape_cast %625 : vector<1xf32> to vector<1x1x1xf32>
    %627 = vector.extract %626[0, 0, 0] : f32 from vector<1x1x1xf32>
    %cst_268 = arith.constant 1.024000e+03 : f32
    %628 = arith.divf %627, %cst_268 : f32
    %629 = vector.broadcast %620 : f32 to vector<8x128xf32>
    %630 = arith.subf %615, %629 : vector<8x128xf32>
    %cst_269 = arith.constant 9.99999974E-6 : f32
    %631 = arith.addf %628, %cst_269 : f32
    %632 = math.rsqrt %631 : f32
    %633 = vector.broadcast %632 : f32 to vector<8x128xf32>
    %634 = arith.mulf %630, %633 : vector<8x128xf32>
    %c0_270 = arith.constant 0 : index
    %c7_271 = arith.constant 7 : index
    %635 = memref.load %arg13[%c0_270, %c7_271] : memref<1x8xf32, #tpu.memory_space<smem>>
    %636 = vector.broadcast %635 : f32 to vector<8x128xf32>
    %637 = arith.mulf %634, %636 : vector<8x128xf32>
    %c0_272 = arith.constant 0 : index
    %c7_273 = arith.constant 7 : index
    %638 = memref.load %arg14[%c0_272, %c7_273] : memref<1x8xf32, #tpu.memory_space<smem>>
    %639 = vector.broadcast %638 : f32 to vector<8x128xf32>
    %640 = arith.addf %637, %639 : vector<8x128xf32>
    %cst_274 = arith.constant 0.000000e+00 : f32
    %641 = vector.broadcast %cst_274 : f32 to vector<8x128xf32>
    %642 = arith.maximumf %640, %641 : vector<8x128xf32>
    %643 = tpu.concatenate %187, %252, %317, %382, %447, %512, %577, %642 in 1 : vector<8x128xf32>, vector<8x128xf32>, vector<8x128xf32>, vector<8x128xf32>, vector<8x128xf32>, vector<8x128xf32>, vector<8x128xf32>, vector<8x128xf32> -> vector<8x1024xf32>
    %c0_275 = arith.constant 0 : index
    %c0_276 = arith.constant 0 : index
    %644 = vector.load %arg15[%c0_275, %c0_276] : memref<1024x128xf32, #tpu.memory_space<vmem>>, vector<1024x128xf32>
    %cst_277 = arith.constant dense<0.000000e+00> : vector<8x128xf32>
    %645 = tpu.matmul %643, %644, %cst_277 {dimension_numbers = #tpu.dot_dimension_numbers<[1], [0], [0], [1], [0, 0, 1, 1], [], []>} : vector<8x1024xf32>, vector<1024x128xf32>, vector<8x128xf32> -> vector<8x128xf32>
    %c0_278 = arith.constant 0 : index
    %c0_279 = arith.constant 0 : index
    %646 = vector.load %arg16[%c0_278, %c0_279] : memref<1x128xf32, #tpu.memory_space<vmem>>, vector<1x128xf32>
    %647 = vector.broadcast %646 : vector<1x128xf32> to vector<8x128xf32>
    %648 = arith.addf %645, %647 : vector<8x128xf32>
    %cst_280 = arith.constant dense<0.000000e+00> : vector<128xf32>
    %649 = vector.multi_reduction <add>, %648, %cst_280 [0] : vector<8x128xf32> to vector<128xf32>
    %650 = vector.shape_cast %649 : vector<128xf32> to vector<1x128xf32>
    %cst_281 = arith.constant 8.000000e+00 : f32
    %651 = vector.broadcast %cst_281 : f32 to vector<1x128xf32>
    %652 = arith.divf %650, %651 : vector<1x128xf32>
    %653 = vector.broadcast %652 : vector<1x128xf32> to vector<8x128xf32>
    %654 = arith.subf %648, %653 : vector<8x128xf32>
    %655 = arith.mulf %654, %654 : vector<8x128xf32>
    %cst_282 = arith.constant dense<0.000000e+00> : vector<128xf32>
    %656 = vector.multi_reduction <add>, %655, %cst_282 [0] : vector<8x128xf32> to vector<128xf32>
    %657 = vector.shape_cast %656 : vector<128xf32> to vector<1x128xf32>
    %cst_283 = arith.constant 8.000000e+00 : f32
    %658 = vector.broadcast %cst_283 : f32 to vector<1x128xf32>
    %659 = arith.divf %657, %658 : vector<1x128xf32>
    %660 = vector.broadcast %652 : vector<1x128xf32> to vector<8x128xf32>
    %661 = arith.subf %648, %660 : vector<8x128xf32>
    %cst_284 = arith.constant 9.99999974E-6 : f32
    %662 = vector.broadcast %cst_284 : f32 to vector<1x128xf32>
    %663 = arith.addf %659, %662 : vector<1x128xf32>
    %664 = math.rsqrt %663 : vector<1x128xf32>
    %665 = vector.broadcast %664 : vector<1x128xf32> to vector<8x128xf32>
    %666 = arith.mulf %661, %665 : vector<8x128xf32>
    %c0_285 = arith.constant 0 : index
    %c0_286 = arith.constant 0 : index
    %667 = vector.load %arg17[%c0_285, %c0_286] : memref<1x128xf32, #tpu.memory_space<vmem>>, vector<1x128xf32>
    %668 = vector.broadcast %667 : vector<1x128xf32> to vector<8x128xf32>
    %669 = arith.mulf %666, %668 : vector<8x128xf32>
    %c0_287 = arith.constant 0 : index
    %c0_288 = arith.constant 0 : index
    %670 = vector.load %arg18[%c0_287, %c0_288] : memref<1x128xf32, #tpu.memory_space<vmem>>, vector<1x128xf32>
    %671 = vector.broadcast %670 : vector<1x128xf32> to vector<8x128xf32>
    %672 = arith.addf %669, %671 : vector<8x128xf32>
    %cst_289 = arith.constant 0.000000e+00 : f32
    %673 = vector.broadcast %cst_289 : f32 to vector<8x128xf32>
    %674 = arith.maximumf %672, %673 : vector<8x128xf32>
    %c0_290 = arith.constant 0 : index
    %c0_291 = arith.constant 0 : index
    %675 = vector.load %arg19[%c0_290, %c0_291] : memref<8x128xf32, #tpu.memory_space<vmem>>, vector<8x128xf32>
    tpu.vector_store %arg19[%c0_290, %c0_291], %674 {strides = array<i32>} : memref<8x128xf32, #tpu.memory_space<vmem>>, vector<8x128xf32>,
    return
  }
}

</mosaic_0001>

<llo_original>
// kernel: tpu_custom_call.1
$region0: #{tpu_custom_call.1}
  #allocation0 [shape = 'u32[]', space=smem, size = 0x4, offset = 0x4, fixed_abs, tag = 'smem constant byte address 0x4 - core index']
  #allocation1 [shape = 'u32[144,128]{1,0:T(1,128)}', space=vmem, size = 0x12000, scoped, tag = 'internal scratch']
  %s0 = inlined_call_operand.hbm [shape: f32[8,128], index: 0, kind: input, shape index: {}]
  %s1 = inlined_call_operand.hbm [shape: f32[8,128], index: 1, kind: input, shape index: {}]
  %s2 = inlined_call_operand.hbm [shape: f32[8,128], index: 2, kind: input, shape index: {}]
  %s3 = inlined_call_operand.hbm [shape: f32[8,128], index: 3, kind: input, shape index: {}]
  %s4 = inlined_call_operand.hbm [shape: f32[8,128], index: 4, kind: input, shape index: {}]
  %s5 = inlined_call_operand.vmem [shape: f32[8,128], index: 5, kind: input, shape index: {}]
  %s6 = inlined_call_operand.hbm [shape: f32[8,128], index: 6, kind: input, shape index: {}]
  %s7 = inlined_call_operand.hbm [shape: f32[8,128], index: 7, kind: input, shape index: {}]
  %s8 = inlined_call_operand.hbm [shape: f32[8,128], index: 8, kind: input, shape index: {}]
  %s9 = inlined_call_operand.hbm [shape: f32[1,3], index: 9, kind: input, shape index: {}]
  %s10 = inlined_call_operand.vmem [shape: f32[1,3], index: 10, kind: input, shape index: {}]
  %s11 = inlined_call_operand.vmem [shape: f32[8,9], index: 11, kind: input, shape index: {}]
  %s12 = inlined_call_operand.vmem [shape: f32[1,8], index: 12, kind: input, shape index: {}]
  %s13 = inlined_call_operand.vmem [shape: f32[1,8], index: 13, kind: input, shape index: {}]
  %s14 = inlined_call_operand.vmem [shape: f32[1,8], index: 14, kind: input, shape index: {}]
  %s15 = inlined_call_operand.hbm [shape: f32[1024,128], index: 15, kind: input, shape index: {}]
  %s16 = inlined_call_operand.vmem [shape: f32[1,128], index: 16, kind: input, shape index: {}]
  %s17 = inlined_call_operand.vmem [shape: f32[1,128], index: 17, kind: input, shape index: {}]
  %s18 = inlined_call_operand.vmem [shape: f32[1,128], index: 18, kind: input, shape index: {}]
  %s19 = inlined_call_operand.hbm [shape: f32[8,128], index: 19, kind: output, shape index: {}]
  %s20 = sld [smem:[#allocation0]]
  $region146: #{tpu_custom_call.1} parent=0
    _
  %s22 = ssub.s32 1, %s20
  %s23 = scalar_select 0, %s22, %s20
  $region1: #{tpu_custom_call.1} parent=0
    #allocation2 [shape = 'u8[4096]{0}', space=vmem, size = 0x1000, scoped, tag = 'input window, operand 0, single buffered']
    #allocation3 [shape = 's32[1]{0}', space=sflag, size = 0x4, scoped, tag = 'scoped memory for tpu_custom_call.1']
    #allocation4 [shape = 's32[1]{0}', space=sflag, size = 0x4, scoped, tag = 'scoped memory for tpu_custom_call.1']
    #allocation5 [shape = 's32[1]{0}', space=sflag, size = 0x4, scoped, tag = 'scoped memory for tpu_custom_call.1']
    #allocation6 [shape = 's32[1]{0}', space=sflag, size = 0x4, scoped, tag = 'scoped memory for tpu_custom_call.1']
    #allocation7 [shape = 'u8[4096]{0}', space=vmem, size = 0x1000, scoped, tag = 'input window, operand 1, single buffered']
    #allocation8 [shape = 's32[1]{0}', space=sflag, size = 0x4, scoped, tag = 'scoped memory for tpu_custom_call.1']
    #allocation9 [shape = 'u8[4096]{0}', space=vmem, size = 0x1000, scoped, tag = 'input window, operand 2, single buffered']
    #allocation10 [shape = 'u8[4096]{0}', space=vmem, size = 0x1000, scoped, tag = 'input window, operand 3, single buffered']
    #allocation11 [shape = 's32[1]{0}', space=sflag, size = 0x4, scoped, tag = 'scoped memory for tpu_custom_call.1']
    #allocation12 [shape = 'u8[4096]{0}', space=vmem, size = 0x1000, scoped, tag = 'input window, operand 4, single buffered']
    #allocation13 [shape = 'u8[4096]{0}', space=vmem, size = 0x1000, scoped, tag = 'input window, operand 6, single buffered']
    #allocation14 [shape = 's32[1]{0}', space=sflag, size = 0x4, scoped, tag = 'scoped memory for tpu_custom_call.1']
    #allocation15 [shape = 'u8[4096]{0}', space=vmem, size = 0x1000, scoped, tag = 'input window, operand 7, single buffered']
    #allocation16 [shape = 'u8[4096]{0}', space=vmem, size = 0x1000, scoped, tag = 'input window, operand 8, single buffered']
    #allocation17 [shape = 's32[1]{0}', space=sflag, size = 0x4, scoped, tag = 'scoped memory for tpu_custom_call.1']
    #allocation18 [shape = 'u8[512]{0}', space=smem, size = 0x200, scoped, tag = 'input window, operand 9, single buffered']
    #allocation19 [shape = 'u8[512]{0}', space=smem, size = 0x200, scoped, tag = 'input window, operand 10, single buffered']
    #allocation20 [shape = 'u8[4096]{0}', space=smem, size = 0x1000, scoped, tag = 'input window, operand 11, single buffered']
    #allocation21 [shape = 's32[1]{0}', space=sflag, size = 0x4, scoped, tag = 'scoped memory for tpu_custom_call.1']
    #allocation22 [shape = 'u8[512]{0}', space=smem, size = 0x200, scoped, tag = 'input window, operand 12, single buffered']
    #allocation23 [shape = 'u8[512]{0}', space=smem, size = 0x200, scoped, tag = 'input window, operand 13, single buffered']
    #allocation24 [shape = 's32[1]{0}', space=sflag, size = 0x4, scoped, tag = 'scoped memory for tpu_custom_call.1']
    #allocation25 [shape = 'u8[512]{0}', space=smem, size = 0x200, scoped, tag = 'input window, operand 14, single buffered']
    #allocation26 [shape = 'u8[524288]{0}', space=vmem, size = 0x80000, scoped, tag = 'input window, operand 15, single buffered']
    #allocation27 [shape = 'u8[4096]{0}', space=vmem, size = 0x1000, scoped, tag = 'output window, operand 0, single buffered']
    %24 = vsyncpa [#allocation3], 0
    %25 = vsyncpa [#allocation8], 0
    %26 = vsyncpa [#allocation11], 0
    %27 = vsyncpa [#allocation14], 0
    %28 = vsyncpa [#allocation17], 0
    %29 = vsyncpa [#allocation5], 0
    %30 = vsyncpa [#allocation6], 0
    %31 = vsyncpa [#allocation21], 0
    %32 = vsyncpa [#allocation24], 0
    %33 = vsyncpa [#allocation4], 0
    // Predicated region
    $region2: #{tpu_custom_call.1} parent=1 // pred_check
      _
    $region3: #{tpu_custom_call.1} parent=1 // pred_check_branch
      %35 = sbr.rel (0) target = $region5
    $region4: #{tpu_custom_call.1} parent=1 // pred_region
      %s37 = ssub.s32 128, 128
      %38 = vsyncadd [#allocation3], %s37
      %s40 = sshll.u32 [#allocation2], 4
      %s41 = int_to_ptr.vmem [resolvable:$true] %s40
      %43 = dma.hbm_to_vmem [thread:$0]  %s0, 128, %s41, [#allocation3]
    $region5: #{tpu_custom_call.1} parent=1 // pred_fallthru
      _
    // Predicated region
    $region6: #{tpu_custom_call.1} parent=1 // pred_check
      _
    $region7: #{tpu_custom_call.1} parent=1 // pred_check_branch
      %45 = sbr.rel (0) target = $region9
    $region8: #{tpu_custom_call.1} parent=1 // pred_region
      %s47 = ssub.s32 128, 128
      %48 = vsyncadd [#allocation8], %s47
      %s50 = sshll.u32 [#allocation7], 4
      %s51 = int_to_ptr.vmem [resolvable:$true] %s50
      %53 = dma.hbm_to_vmem [thread:$0]  %s1, 128, %s51, [#allocation8]
    $region9: #{tpu_custom_call.1} parent=1 // pred_fallthru
      _
    // Predicated region
    $region10: #{tpu_custom_call.1} parent=1 // pred_check
      _
    $region11: #{tpu_custom_call.1} parent=1 // pred_check_branch
      %55 = sbr.rel (0) target = $region13
    $region12: #{tpu_custom_call.1} parent=1 // pred_region
      %s57 = ssub.s32 128, 128
      %58 = vsyncadd [#allocation8], %s57
      %s60 = sshll.u32 [#allocation9], 4
      %s61 = int_to_ptr.vmem [resolvable:$true] %s60
      %63 = dma.hbm_to_vmem [thread:$0]  %s2, 128, %s61, [#allocation8]
    $region13: #{tpu_custom_call.1} parent=1 // pred_fallthru
      _
    // Predicated region
    $region14: #{tpu_custom_call.1} parent=1 // pred_check
      _
    $region15: #{tpu_custom_call.1} parent=1 // pred_check_branch
      %65 = sbr.rel (0) target = $region17
    $region16: #{tpu_custom_call.1} parent=1 // pred_region
      %s67 = ssub.s32 128, 128
      %68 = vsyncadd [#allocation11], %s67
      %s70 = sshll.u32 [#allocation10], 4
      %s71 = int_to_ptr.vmem [resolvable:$true] %s70
      %73 = dma.hbm_to_vmem [thread:$0]  %s3, 128, %s71, [#allocation11]
    $region17: #{tpu_custom_call.1} parent=1 // pred_fallthru
      _
    // Predicated region
    $region18: #{tpu_custom_call.1} parent=1 // pred_check
      _
    $region19: #{tpu_custom_call.1} parent=1 // pred_check_branch
      %75 = sbr.rel (0) target = $region21
    $region20: #{tpu_custom_call.1} parent=1 // pred_region
      %s77 = ssub.s32 128, 128
      %78 = vsyncadd [#allocation11], %s77
      %s80 = sshll.u32 [#allocation12], 4
      %s81 = int_to_ptr.vmem [resolvable:$true] %s80
      %83 = dma.hbm_to_vmem [thread:$0]  %s4, 128, %s81, [#allocation11]
    $region21: #{tpu_custom_call.1} parent=1 // pred_fallthru
      _
    // Predicated region
    $region22: #{tpu_custom_call.1} parent=1 // pred_check
      _
    $region23: #{tpu_custom_call.1} parent=1 // pred_check_branch
      %85 = sbr.rel (0) target = $region25
    $region24: #{tpu_custom_call.1} parent=1 // pred_region
      _
    $region25: #{tpu_custom_call.1} parent=1 // pred_fallthru
      _
    // Predicated region
    $region26: #{tpu_custom_call.1} parent=1 // pred_check
      _
    $region27: #{tpu_custom_call.1} parent=1 // pred_check_branch
      %87 = sbr.rel (0) target = $region29
    $region28: #{tpu_custom_call.1} parent=1 // pred_region
      %s89 = ssub.s32 128, 128
      %90 = vsyncadd [#allocation14], %s89
      %s92 = sshll.u32 [#allocation13], 4
      %s93 = int_to_ptr.vmem [resolvable:$true] %s92
      %95 = dma.hbm_to_vmem [thread:$0]  %s6, 128, %s93, [#allocation14]
    $region29: #{tpu_custom_call.1} parent=1 // pred_fallthru
      _
    // Predicated region
    $region30: #{tpu_custom_call.1} parent=1 // pred_check
      _
    $region31: #{tpu_custom_call.1} parent=1 // pred_check_branch
      %97 = sbr.rel (0) target = $region33
    $region32: #{tpu_custom_call.1} parent=1 // pred_region
      %s99 = ssub.s32 128, 128
      %100 = vsyncadd [#allocation14], %s99
      %s102 = sshll.u32 [#allocation15], 4
      %s103 = int_to_ptr.vmem [resolvable:$true] %s102
      %105 = dma.hbm_to_vmem [thread:$0]  %s7, 128, %s103, [#allocation14]
    $region33: #{tpu_custom_call.1} parent=1 // pred_fallthru
      _
    // Predicated region
    $region34: #{tpu_custom_call.1} parent=1 // pred_check
      _
    $region35: #{tpu_custom_call.1} parent=1 // pred_check_branch
      %107 = sbr.rel (0) target = $region37
    $region36: #{tpu_custom_call.1} parent=1 // pred_region
      %s109 = ssub.s32 128, 128
      %110 = vsyncadd [#allocation17], %s109
      %s112 = sshll.u32 [#allocation16], 4
      %s113 = int_to_ptr.vmem [resolvable:$true] %s112
      %115 = dma.hbm_to_vmem [thread:$0]  %s8, 128, %s113, [#allocation17]
    $region37: #{tpu_custom_call.1} parent=1 // pred_fallthru
      _
    // Predicated region
    $region38: #{tpu_custom_call.1} parent=1 // pred_check
      _
    $region39: #{tpu_custom_call.1} parent=1 // pred_check_branch
      %117 = sbr.rel (0) target = $region41
    $region40: #{tpu_custom_call.1} parent=1 // pred_region
      %s119 = ssub.s32 16, 16
      %120 = vsyncadd [#allocation5], %s119
      %123 = dma.hbm_to_smem %s9, 16, [#allocation18], [#allocation5]
    $region41: #{tpu_custom_call.1} parent=1 // pred_fallthru
      _
    // Predicated region
    $region42: #{tpu_custom_call.1} parent=1 // pred_check
      _
    $region43: #{tpu_custom_call.1} parent=1 // pred_check_branch
      %125 = sbr.rel (0) target = $region45
    $region44: #{tpu_custom_call.1} parent=1 // pred_region
      %s127 = ssub.s32 16, 16
      %128 = vsyncadd [#allocation6], %s127
      %s130 = sshll.u32 %s10, 4
      %s131 = int_to_ptr.vmem [resolvable:$true] %s130
      %133 = dma.vmem_to_smem %s131, 16, [#allocation19], [#allocation6]
    $region45: #{tpu_custom_call.1} parent=1 // pred_fallthru
      _
    // Predicated region
    $region46: #{tpu_custom_call.1} parent=1 // pred_check
      _
    $region47: #{tpu_custom_call.1} parent=1 // pred_check_branch
      %135 = sbr.rel (0) target = $region49
    $region48: #{tpu_custom_call.1} parent=1 // pred_region
      %s137 = ssub.s32 128, 128
      %138 = vsyncadd [#allocation21], %s137
      %s140 = sshll.u32 %s11, 4
      %s141 = int_to_ptr.vmem [resolvable:$true] %s140
      %143 = dma.vmem_to_smem %s141, 128, [#allocation20], [#allocation21]
    $region49: #{tpu_custom_call.1} parent=1 // pred_fallthru
      _
    // Predicated region
    $region50: #{tpu_custom_call.1} parent=1 // pred_check
      _
    $region51: #{tpu_custom_call.1} parent=1 // pred_check_branch
      %145 = sbr.rel (0) target = $region53
    $region52: #{tpu_custom_call.1} parent=1 // pred_region
      %s147 = ssub.s32 16, 16
      %148 = vsyncadd [#allocation21], %s147
      %s150 = sshll.u32 %s12, 4
      %s151 = int_to_ptr.vmem [resolvable:$true] %s150
      %153 = dma.vmem_to_smem %s151, 16, [#allocation22], [#allocation21]
    $region53: #{tpu_custom_call.1} parent=1 // pred_fallthru
      _
    // Predicated region
    $region54: #{tpu_custom_call.1} parent=1 // pred_check
      _
    $region55: #{tpu_custom_call.1} parent=1 // pred_check_branch
      %155 = sbr.rel (0) target = $region57
    $region56: #{tpu_custom_call.1} parent=1 // pred_region
      %s157 = ssub.s32 16, 16
      %158 = vsyncadd [#allocation24], %s157
      %s160 = sshll.u32 %s13, 4
      %s161 = int_to_ptr.vmem [resolvable:$true] %s160
      %163 = dma.vmem_to_smem %s161, 16, [#allocation23], [#allocation24]
    $region57: #{tpu_custom_call.1} parent=1 // pred_fallthru
      _
    // Predicated region
    $region58: #{tpu_custom_call.1} parent=1 // pred_check
      _
    $region59: #{tpu_custom_call.1} parent=1 // pred_check_branch
      %165 = sbr.rel (0) target = $region61
    $region60: #{tpu_custom_call.1} parent=1 // pred_region
      %s167 = ssub.s32 16, 16
      %168 = vsyncadd [#allocation24], %s167
      %s170 = sshll.u32 %s14, 4
      %s171 = int_to_ptr.vmem [resolvable:$true] %s170
      %173 = dma.vmem_to_smem %s171, 16, [#allocation25], [#allocation24]
    $region61: #{tpu_custom_call.1} parent=1 // pred_fallthru
      _
    // Predicated region
    $region62: #{tpu_custom_call.1} parent=1 // pred_check
      _
    $region63: #{tpu_custom_call.1} parent=1 // pred_check_branch
      %175 = sbr.rel (0) target = $region65
    $region64: #{tpu_custom_call.1} parent=1 // pred_region
      %s177 = ssub.s32 16384, 16384
      %178 = vsyncadd [#allocation17], %s177
      %s179 = sshll.u32 [#allocation26], 4
      %s180 = int_to_ptr.vmem [resolvable:$true] %s179
      %185 = dma.hbm_to_vmem [thread:$0]  %s15, 16384, %s180, [#allocation17], 128, 128, 8
    $region65: #{tpu_custom_call.1} parent=1 // pred_fallthru
      _
    // Predicated region
    $region66: #{tpu_custom_call.1} parent=1 // pred_check
      _
    $region67: #{tpu_custom_call.1} parent=1 // pred_check_branch
      %187 = sbr.rel (0) target = $region69
    $region68: #{tpu_custom_call.1} parent=1 // pred_region
      _
    $region69: #{tpu_custom_call.1} parent=1 // pred_fallthru
      _
    // Predicated region
    $region70: #{tpu_custom_call.1} parent=1 // pred_check
      _
    $region71: #{tpu_custom_call.1} parent=1 // pred_check_branch
      %189 = sbr.rel (0) target = $region73
    $region72: #{tpu_custom_call.1} parent=1 // pred_region
      _
    $region73: #{tpu_custom_call.1} parent=1 // pred_fallthru
      _
    // Predicated region
    $region74: #{tpu_custom_call.1} parent=1 // pred_check
      _
    $region75: #{tpu_custom_call.1} parent=1 // pred_check_branch
      %191 = sbr.rel (0) target = $region77
    $region76: #{tpu_custom_call.1} parent=1 // pred_region
      _
    $region77: #{tpu_custom_call.1} parent=1 // pred_fallthru
      _
    // Predicated region
    $region78: #{tpu_custom_call.1} parent=1 // pred_check
      _
    $region79: #{tpu_custom_call.1} parent=1 // pred_check_branch
      %193 = sbr.rel (0) target = $region81
    $region80: #{tpu_custom_call.1} parent=1 // pred_region
      %194 = dma.done [#allocation3], 128
    $region81: #{tpu_custom_call.1} parent=1 // pred_fallthru
      _
    // Predicated region
    $region82: #{tpu_custom_call.1} parent=1 // pred_check
      _
    $region83: #{tpu_custom_call.1} parent=1 // pred_check_branch
      %196 = sbr.rel (0) target = $region85
    $region84: #{tpu_custom_call.1} parent=1 // pred_region
      %197 = dma.done [#allocation8], 128
    $region85: #{tpu_custom_call.1} parent=1 // pred_fallthru
      _
    // Predicated region
    $region86: #{tpu_custom_call.1} parent=1 // pred_check
      _
    $region87: #{tpu_custom_call.1} parent=1 // pred_check_branch
      %199 = sbr.rel (0) target = $region89
    $region88: #{tpu_custom_call.1} parent=1 // pred_region
      %200 = dma.done [#allocation8], 128
    $region89: #{tpu_custom_call.1} parent=1 // pred_fallthru
      _
    // Predicated region
    $region90: #{tpu_custom_call.1} parent=1 // pred_check
      _
    $region91: #{tpu_custom_call.1} parent=1 // pred_check_branch
      %202 = sbr.rel (0) target = $region93
    $region92: #{tpu_custom_call.1} parent=1 // pred_region
      %203 = dma.done [#allocation11], 128
    $region93: #{tpu_custom_call.1} parent=1 // pred_fallthru
      _
    // Predicated region
    $region94: #{tpu_custom_call.1} parent=1 // pred_check
      _
    $region95: #{tpu_custom_call.1} parent=1 // pred_check_branch
      %205 = sbr.rel (0) target = $region97
    $region96: #{tpu_custom_call.1} parent=1 // pred_region
      %206 = dma.done [#allocation11], 128
    $region97: #{tpu_custom_call.1} parent=1 // pred_fallthru
      _
    // Predicated region
    $region98: #{tpu_custom_call.1} parent=1 // pred_check
      _
    $region99: #{tpu_custom_call.1} parent=1 // pred_check_branch
      %208 = sbr.rel (0) target = $region101
    $region100: #{tpu_custom_call.1} parent=1 // pred_region
      %209 = dma.done [#allocation14], 128
    $region101: #{tpu_custom_call.1} parent=1 // pred_fallthru
      _
    // Predicated region
    $region102: #{tpu_custom_call.1} parent=1 // pred_check
      _
    $region103: #{tpu_custom_call.1} parent=1 // pred_check_branch
      %211 = sbr.rel (0) target = $region105
    $region104: #{tpu_custom_call.1} parent=1 // pred_region
      %212 = dma.done [#allocation14], 128
    $region105: #{tpu_custom_call.1} parent=1 // pred_fallthru
      _
    // Predicated region
    $region106: #{tpu_custom_call.1} parent=1 // pred_check
      _
    $region107: #{tpu_custom_call.1} parent=1 // pred_check_branch
      %214 = sbr.rel (0) target = $region109
    $region108: #{tpu_custom_call.1} parent=1 // pred_region
      %215 = dma.done [#allocation17], 128
    $region109: #{tpu_custom_call.1} parent=1 // pred_fallthru
      _
    // Predicated region
    $region110: #{tpu_custom_call.1} parent=1 // pred_check
      _
    $region111: #{tpu_custom_call.1} parent=1 // pred_check_branch
      %217 = sbr.rel (0) target = $region113
    $region112: #{tpu_custom_call.1} parent=1 // pred_region
      %218 = dma.done [#allocation5], 16
    $region113: #{tpu_custom_call.1} parent=1 // pred_fallthru
      _
    // Predicated region
    $region114: #{tpu_custom_call.1} parent=1 // pred_check
      _
    $region115: #{tpu_custom_call.1} parent=1 // pred_check_branch
      %220 = sbr.rel (0) target = $region117
    $region116: #{tpu_custom_call.1} parent=1 // pred_region
      %221 = dma.done [#allocation6], 16
    $region117: #{tpu_custom_call.1} parent=1 // pred_fallthru
      _
    // Predicated region
    $region118: #{tpu_custom_call.1} parent=1 // pred_check
      _
    $region119: #{tpu_custom_call.1} parent=1 // pred_check_branch
      %223 = sbr.rel (0) target = $region121
    $region120: #{tpu_custom_call.1} parent=1 // pred_region
      %224 = dma.done [#allocation21], 128
    $region121: #{tpu_custom_call.1} parent=1 // pred_fallthru
      _
    // Predicated region
    $region122: #{tpu_custom_call.1} parent=1 // pred_check
      _
    $region123: #{tpu_custom_call.1} parent=1 // pred_check_branch
      %226 = sbr.rel (0) target = $region125
    $region124: #{tpu_custom_call.1} parent=1 // pred_region
      %227 = dma.done [#allocation21], 16
    $region125: #{tpu_custom_call.1} parent=1 // pred_fallthru
      _
    // Predicated region
    $region126: #{tpu_custom_call.1} parent=1 // pred_check
      _
    $region127: #{tpu_custom_call.1} parent=1 // pred_check_branch
      %229 = sbr.rel (0) target = $region129
    $region128: #{tpu_custom_call.1} parent=1 // pred_region
      %230 = dma.done [#allocation24], 16
    $region129: #{tpu_custom_call.1} parent=1 // pred_fallthru
      _
    // Predicated region
    $region130: #{tpu_custom_call.1} parent=1 // pred_check
      _
    $region131: #{tpu_custom_call.1} parent=1 // pred_check_branch
      %232 = sbr.rel (0) target = $region133
    $region132: #{tpu_custom_call.1} parent=1 // pred_region
      %233 = dma.done [#allocation24], 16
    $region133: #{tpu_custom_call.1} parent=1 // pred_fallthru
      _
    // Predicated region
    $region134: #{tpu_custom_call.1} parent=1 // pred_check
      _
    $region135: #{tpu_custom_call.1} parent=1 // pred_check_branch
      %235 = sbr.rel (0) target = $region137
    $region136: #{tpu_custom_call.1} parent=1 // pred_region
      %236 = dma.done [#allocation17], 16384
    $region137: #{tpu_custom_call.1} parent=1 // pred_fallthru
      _
    %237 = sfence
    %v238 = vlaneseq
    %v239 = vand.u32 %v238, 127
    %vm240 = vcmp.ge.s32.totalorder %v239, 1
    %v241 = vsel %vm240, 1, 0
    %v242 = vcvt.s32.f32 %v241
    %vm243 = vcmp.le.s32.totalorder %v239, 126
    %v244 = vsel %vm243, 1, 0
    %v245 = vcvt.s32.f32 %v244
    %v246 = vld [vmem:[#allocation2] sm:$0xff]
    %v247 = vtanh.pop %v246
    %v248 = vld [vmem:[#allocation7] sm:$0xff]
    %v249 = vtanh.pop %v248
    %v250 = vld [vmem:[#allocation9] sm:$0xff]
    %v251 = vtanh.pop %v250
    %252 = vadd.xlane.f32.xlu0 %v247
    %v253 = vpop.xlane.xlu0 %252
    %v254 = vrot.slane %v253, 4
    %v255 = vadd.f32 %v253, %v254
    %v256 = vrot.slane %v255, 2
    %v257 = vadd.f32 %v255, %v256
    %v258 = vrot.slane %v257, 1
    %v259 = vadd.f32 %v257, %v258
    %s260 = vtos %v259
    %v261 = vrcp.pop 1024.0
    %s262 = vtos %v261
    %s263 = smul.f32 %s260, %s262
    %v264 = vstv %s263
    %v265 = vsub.f32 %v247, %v264
    %v266 = vmul.f32 %v265, %v265
    %267 = vadd.xlane.f32.xlu0 %v266
    %v268 = vpop.xlane.xlu0 %267
    %v269 = vrot.slane %v268, 4
    %v270 = vadd.f32 %v268, %v269
    %v271 = vrot.slane %v270, 2
    %v272 = vadd.f32 %v270, %v271
    %v273 = vrot.slane %v272, 1
    %v274 = vadd.f32 %v272, %v273
    %s275 = vtos %v274
    %v276 = vrcp.pop 1024.0
    %s277 = vtos %v276
    %s278 = smul.f32 %s275, %s277
    %s279 = sld [smem:[#allocation18]]
    %s280 = sadd.f32 %s278, 1e-05
    %v281 = vstv %s280
    %v282 = vrsqrt.pop %v281
    %s283 = vtos %v282
    %s284 = smul.f32 %s279, %s283
    %s285 = sld [smem:[#allocation19]]
    %s286 = smul.f32 %s284, %s263
    %s287 = ssub.f32 %s285, %s286
    %v288 = vstv %s284
    %v289 = vmul.f32 %v288, %v249
    %v290 = vstv %s287
    %v291 = vmul.f32 %v290, %v242
    %v292 = vadd.f32 %v289, %v291
    %v293 = vmul.f32 %v288, %v247
    %v294 = vadd.f32 %v293, %v290
    %v295 = vmul.f32 %v288, %v251
    %v296 = vmul.f32 %v290, %v245
    %v297 = vadd.f32 %v295, %v296
    %v298 = vld [vmem:[#allocation10] sm:$0xff]
    %v299 = vld [vmem:[#allocation12] sm:$0xff]
    %v300 = vld [vmem:[%s5] sm:$0xff]
    %301 = vadd.xlane.f32.xlu0 %v298
    %v302 = vpop.xlane.xlu0 %301
    %v303 = vrot.slane %v302, 4
    %v304 = vadd.f32 %v302, %v303
    %v305 = vrot.slane %v304, 2
    %v306 = vadd.f32 %v304, %v305
    %v307 = vrot.slane %v306, 1
    %v308 = vadd.f32 %v306, %v307
    %s309 = vtos %v308
    %v310 = vrcp.pop 1024.0
    %s311 = vtos %v310
    %s312 = smul.f32 %s309, %s311
    %v313 = vstv %s312
    %v314 = vsub.f32 %v298, %v313
    %v315 = vmul.f32 %v314, %v314
    %316 = vadd.xlane.f32.xlu0 %v315
    %v317 = vpop.xlane.xlu0 %316
    %v318 = vrot.slane %v317, 4
    %v319 = vadd.f32 %v317, %v318
    %v320 = vrot.slane %v319, 2
    %v321 = vadd.f32 %v319, %v320
    %v322 = vrot.slane %v321, 1
    %v323 = vadd.f32 %v321, %v322
    %s324 = vtos %v323
    %v325 = vrcp.pop 1024.0
    %s326 = vtos %v325
    %s327 = smul.f32 %s324, %s326
    %s328 = sld [smem:[#allocation18 + $0x1]]
    %s329 = sadd.f32 %s327, 1e-05
    %v330 = vstv %s329
    %v331 = vrsqrt.pop %v330
    %s332 = vtos %v331
    %s333 = smul.f32 %s328, %s332
    %s334 = sld [smem:[#allocation19 + $0x1]]
    %s335 = smul.f32 %s333, %s312
    %s336 = ssub.f32 %s334, %s335
    %v337 = vstv %s333
    %v338 = vmul.f32 %v337, %v299
    %v339 = vstv %s336
    %v340 = vmul.f32 %v339, %v242
    %v341 = vadd.f32 %v338, %v340
    %v342 = vmul.f32 %v337, %v298
    %v343 = vadd.f32 %v342, %v339
    %v344 = vmul.f32 %v337, %v300
    %v345 = vmul.f32 %v339, %v245
    %v346 = vadd.f32 %v344, %v345
    %v347 = vld [vmem:[#allocation13] sm:$0xff]
    %v348 = vld [vmem:[#allocation15] sm:$0xff]
    %v349 = vld [vmem:[#allocation16] sm:$0xff]
    %350 = vadd.xlane.f32.xlu0 %v347
    %v351 = vpop.xlane.xlu0 %350
    %v352 = vrot.slane %v351, 4
    %v353 = vadd.f32 %v351, %v352
    %v354 = vrot.slane %v353, 2
    %v355 = vadd.f32 %v353, %v354
    %v356 = vrot.slane %v355, 1
    %v357 = vadd.f32 %v355, %v356
    %s358 = vtos %v357
    %v359 = vrcp.pop 1024.0
    %s360 = vtos %v359
    %s361 = smul.f32 %s358, %s360
    %v362 = vstv %s361
    %v363 = vsub.f32 %v347, %v362
    %v364 = vmul.f32 %v363, %v363
    %365 = vadd.xlane.f32.xlu0 %v364
    %v366 = vpop.xlane.xlu0 %365
    %v367 = vrot.slane %v366, 4
    %v368 = vadd.f32 %v366, %v367
    %v369 = vrot.slane %v368, 2
    %v370 = vadd.f32 %v368, %v369
    %v371 = vrot.slane %v370, 1
    %v372 = vadd.f32 %v370, %v371
    %s373 = vtos %v372
    %v374 = vrcp.pop 1024.0
    %s375 = vtos %v374
    %s376 = smul.f32 %s373, %s375
    %s377 = sld [smem:[#allocation18 + $0x2]]
    %s378 = sadd.f32 %s376, 1e-05
    %v379 = vstv %s378
    %v380 = vrsqrt.pop %v379
    %s381 = vtos %v380
    %s382 = smul.f32 %s377, %s381
    %s383 = sld [smem:[#allocation19 + $0x2]]
    %s384 = smul.f32 %s382, %s361
    %s385 = ssub.f32 %s383, %s384
    %v386 = vstv %s382
    %v387 = vmul.f32 %v386, %v348
    %v388 = vstv %s385
    %v389 = vmul.f32 %v388, %v242
    %v390 = vadd.f32 %v387, %v389
    %v391 = vmul.f32 %v386, %v347
    %v392 = vadd.f32 %v391, %v388
    %v393 = vmul.f32 %v386, %v349
    %v394 = vmul.f32 %v388, %v245
    %v395 = vadd.f32 %v393, %v394
    %s396 = sld [smem:[#allocation20]]
    %s397 = sld [smem:[#allocation20 + $0x1]]
    %s398 = sld [smem:[#allocation20 + $0x2]]
    %s399 = sld [smem:[#allocation20 + $0x3]]
    %s400 = sld [smem:[#allocation20 + $0x4]]
    %s401 = sld [smem:[#allocation20 + $0x5]]
    %s402 = sld [smem:[#allocation20 + $0x6]]
    %s403 = sld [smem:[#allocation20 + $0x7]]
    %s404 = sld [smem:[#allocation20 + $0x8]]
    %v405 = vstv %s396
    %v406 = vmul.f32 %v292, %v405
    %v407 = vstv %s397
    %v408 = vmul.f32 %v294, %v407
    %v409 = vstv %s398
    %v410 = vmul.f32 %v297, %v409
    %v411 = vstv %s399
    %v412 = vmul.f32 %v341, %v411
    %v413 = vstv %s400
    %v414 = vmul.f32 %v343, %v413
    %v415 = vstv %s401
    %v416 = vmul.f32 %v346, %v415
    %v417 = vstv %s402
    %v418 = vmul.f32 %v390, %v417
    %v419 = vstv %s403
    %v420 = vmul.f32 %v392, %v419
    %v421 = vstv %s404
    %v422 = vmul.f32 %v395, %v421
    %v423 = vadd.f32 %v406, %v408
    %v424 = vadd.f32 %v410, %v412
    %v425 = vadd.f32 %v414, %v416
    %v426 = vadd.f32 %v418, %v420
    %v427 = vadd.f32 %v423, %v424
    %v428 = vadd.f32 %v425, %v426
    %v429 = vadd.f32 %v427, %v428
    %v430 = vadd.f32 %v429, %v422
    %s431 = sld [smem:[#allocation22]]
    %v432 = vstv %s431
    %v433 = vadd.f32 %v430, %v432
    %434 = vadd.xlane.f32.xlu0 %v433
    %v435 = vpop.xlane.xlu0 %434
    %v436 = vrot.slane %v435, 4
    %v437 = vadd.f32 %v435, %v436
    %v438 = vrot.slane %v437, 2
    %v439 = vadd.f32 %v437, %v438
    %v440 = vrot.slane %v439, 1
    %v441 = vadd.f32 %v439, %v440
    %s442 = vtos %v441
    %v443 = vrcp.pop 1024.0
    %s444 = vtos %v443
    %s445 = smul.f32 %s442, %s444
    %v446 = vstv %s445
    %v447 = vsub.f32 %v433, %v446
    %v448 = vmul.f32 %v447, %v447
    %449 = vadd.xlane.f32.xlu0 %v448
    %v450 = vpop.xlane.xlu0 %449
    %v451 = vrot.slane %v450, 4
    %v452 = vadd.f32 %v450, %v451
    %v453 = vrot.slane %v452, 2
    %v454 = vadd.f32 %v452, %v453
    %v455 = vrot.slane %v454, 1
    %v456 = vadd.f32 %v454, %v455
    %s457 = vtos %v456
    %v458 = vrcp.pop 1024.0
    %s459 = vtos %v458
    %s460 = smul.f32 %s457, %s459
    %s461 = sadd.f32 %s460, 1e-05
    %v462 = vstv %s461
    %v463 = vrsqrt.pop %v462
    %s464 = vtos %v463
    %v465 = vstv %s464
    %v466 = vmul.f32 %v447, %v465
    %s467 = sld [smem:[#allocation23]]
    %v468 = vstv %s467
    %v469 = vmul.f32 %v466, %v468
    %s470 = sld [smem:[#allocation25]]
    %v471 = vstv %s470
    %v472 = vadd.f32 %v469, %v471
    %v473 = vmax.f32 %v472, 0.0
    %s474 = sld [smem:[#allocation20 + $0x80]]
    %s475 = sld [smem:[#allocation20 + $0x81]]
    %s476 = sld [smem:[#allocation20 + $0x82]]
    %s477 = sld [smem:[#allocation20 + $0x83]]
    %s478 = sld [smem:[#allocation20 + $0x84]]
    %s479 = sld [smem:[#allocation20 + $0x85]]
    %s480 = sld [smem:[#allocation20 + $0x86]]
    %s481 = sld [smem:[#allocation20 + $0x87]]
    %s482 = sld [smem:[#allocation20 + $0x88]]
    %v483 = vstv %s474
    %v484 = vmul.f32 %v292, %v483
    %v485 = vstv %s475
    %v486 = vmul.f32 %v294, %v485
    %v487 = vstv %s476
    %v488 = vmul.f32 %v297, %v487
    %v489 = vstv %s477
    %v490 = vmul.f32 %v341, %v489
    %v491 = vstv %s478
    %v492 = vmul.f32 %v343, %v491
    %v493 = vstv %s479
    %v494 = vmul.f32 %v346, %v493
    %v495 = vstv %s480
    %v496 = vmul.f32 %v390, %v495
    %v497 = vstv %s481
    %v498 = vmul.f32 %v392, %v497
    %v499 = vstv %s482
    %v500 = vmul.f32 %v395, %v499
    %v501 = vadd.f32 %v484, %v486
    %v502 = vadd.f32 %v488, %v490
    %v503 = vadd.f32 %v492, %v494
    %v504 = vadd.f32 %v496, %v498
    %v505 = vadd.f32 %v501, %v502
    %v506 = vadd.f32 %v503, %v504
    %v507 = vadd.f32 %v505, %v506
    %v508 = vadd.f32 %v507, %v500
    %s509 = sld [smem:[#allocation22 + $0x1]]
    %v510 = vstv %s509
    %v511 = vadd.f32 %v508, %v510
    %512 = vadd.xlane.f32.xlu0 %v511
    %v513 = vpop.xlane.xlu0 %512
    %v514 = vrot.slane %v513, 4
    %v515 = vadd.f32 %v513, %v514
    %v516 = vrot.slane %v515, 2
    %v517 = vadd.f32 %v515, %v516
    %v518 = vrot.slane %v517, 1
    %v519 = vadd.f32 %v517, %v518
    %s520 = vtos %v519
    %v521 = vrcp.pop 1024.0
    %s522 = vtos %v521
    %s523 = smul.f32 %s520, %s522
    %v524 = vstv %s523
    %v525 = vsub.f32 %v511, %v524
    %v526 = vmul.f32 %v525, %v525
    %527 = vadd.xlane.f32.xlu0 %v526
    %v528 = vpop.xlane.xlu0 %527
    %v529 = vrot.slane %v528, 4
    %v530 = vadd.f32 %v528, %v529
    %v531 = vrot.slane %v530, 2
    %v532 = vadd.f32 %v530, %v531
    %v533 = vrot.slane %v532, 1
    %v534 = vadd.f32 %v532, %v533
    %s535 = vtos %v534
    %v536 = vrcp.pop 1024.0
    %s537 = vtos %v536
    %s538 = smul.f32 %s535, %s537
    %s539 = sadd.f32 %s538, 1e-05
    %v540 = vstv %s539
    %v541 = vrsqrt.pop %v540
    %s542 = vtos %v541
    %v543 = vstv %s542
    %v544 = vmul.f32 %v525, %v543
    %s545 = sld [smem:[#allocation23 + $0x1]]
    %v546 = vstv %s545
    %v547 = vmul.f32 %v544, %v546
    %s548 = sld [smem:[#allocation25 + $0x1]]
    %v549 = vstv %s548
    %v550 = vadd.f32 %v547, %v549
    %v551 = vmax.f32 %v550, 0.0
    %s552 = sld [smem:[#allocation20 + $0x100]]
    %s553 = sld [smem:[#allocation20 + $0x101]]
    %s554 = sld [smem:[#allocation20 + $0x102]]
    %s555 = sld [smem:[#allocation20 + $0x103]]
    %s556 = sld [smem:[#allocation20 + $0x104]]
    %s557 = sld [smem:[#allocation20 + $0x105]]
    %s558 = sld [smem:[#allocation20 + $0x106]]
    %s559 = sld [smem:[#allocation20 + $0x107]]
    %s560 = sld [smem:[#allocation20 + $0x108]]
    %v561 = vstv %s552
    %v562 = vmul.f32 %v292, %v561
    %v563 = vstv %s553
    %v564 = vmul.f32 %v294, %v563
    %v565 = vstv %s554
    %v566 = vmul.f32 %v297, %v565
    %v567 = vstv %s555
    %v568 = vmul.f32 %v341, %v567
    %v569 = vstv %s556
    %v570 = vmul.f32 %v343, %v569
    %v571 = vstv %s557
    %v572 = vmul.f32 %v346, %v571
    %v573 = vstv %s558
    %v574 = vmul.f32 %v390, %v573
    %v575 = vstv %s559
    %v576 = vmul.f32 %v392, %v575
    %v577 = vstv %s560
    %v578 = vmul.f32 %v395, %v577
    %v579 = vadd.f32 %v562, %v564
    %v580 = vadd.f32 %v566, %v568
    %v581 = vadd.f32 %v570, %v572
    %v582 = vadd.f32 %v574, %v576
    %v583 = vadd.f32 %v579, %v580
    %v584 = vadd.f32 %v581, %v582
    %v585 = vadd.f32 %v583, %v584
    %v586 = vadd.f32 %v585, %v578
    %s587 = sld [smem:[#allocation22 + $0x2]]
    %v588 = vstv %s587
    %v589 = vadd.f32 %v586, %v588
    %590 = vadd.xlane.f32.xlu0 %v589
    %v591 = vpop.xlane.xlu0 %590
    %v592 = vrot.slane %v591, 4
    %v593 = vadd.f32 %v591, %v592
    %v594 = vrot.slane %v593, 2
    %v595 = vadd.f32 %v593, %v594
    %v596 = vrot.slane %v595, 1
    %v597 = vadd.f32 %v595, %v596
    %s598 = vtos %v597
    %v599 = vrcp.pop 1024.0
    %s600 = vtos %v599
    %s601 = smul.f32 %s598, %s600
    %v602 = vstv %s601
    %v603 = vsub.f32 %v589, %v602
    %v604 = vmul.f32 %v603, %v603
    %605 = vadd.xlane.f32.xlu0 %v604
    %v606 = vpop.xlane.xlu0 %605
    %v607 = vrot.slane %v606, 4
    %v608 = vadd.f32 %v606, %v607
    %v609 = vrot.slane %v608, 2
    %v610 = vadd.f32 %v608, %v609
    %v611 = vrot.slane %v610, 1
    %v612 = vadd.f32 %v610, %v611
    %s613 = vtos %v612
    %v614 = vrcp.pop 1024.0
    %s615 = vtos %v614
    %s616 = smul.f32 %s613, %s615
    %s617 = sadd.f32 %s616, 1e-05
    %v618 = vstv %s617
    %v619 = vrsqrt.pop %v618
    %s620 = vtos %v619
    %v621 = vstv %s620
    %v622 = vmul.f32 %v603, %v621
    %s623 = sld [smem:[#allocation23 + $0x2]]
    %v624 = vstv %s623
    %v625 = vmul.f32 %v622, %v624
    %s626 = sld [smem:[#allocation25 + $0x2]]
    %v627 = vstv %s626
    %v628 = vadd.f32 %v625, %v627
    %v629 = vmax.f32 %v628, 0.0
    %s630 = sld [smem:[#allocation20 + $0x180]]
    %s631 = sld [smem:[#allocation20 + $0x181]]
    %s632 = sld [smem:[#allocation20 + $0x182]]
    %s633 = sld [smem:[#allocation20 + $0x183]]
    %s634 = sld [smem:[#allocation20 + $0x184]]
    %s635 = sld [smem:[#allocation20 + $0x185]]
    %s636 = sld [smem:[#allocation20 + $0x186]]
    %s637 = sld [smem:[#allocation20 + $0x187]]
    %s638 = sld [smem:[#allocation20 + $0x188]]
    %v639 = vstv %s630
    %v640 = vmul.f32 %v292, %v639
    %v641 = vstv %s631
    %v642 = vmul.f32 %v294, %v641
    %v643 = vstv %s632
    %v644 = vmul.f32 %v297, %v643
    %v645 = vstv %s633
    %v646 = vmul.f32 %v341, %v645
    %v647 = vstv %s634
    %v648 = vmul.f32 %v343, %v647
    %v649 = vstv %s635
    %v650 = vmul.f32 %v346, %v649
    %v651 = vstv %s636
    %v652 = vmul.f32 %v390, %v651
    %v653 = vstv %s637
    %v654 = vmul.f32 %v392, %v653
    %v655 = vstv %s638
    %v656 = vmul.f32 %v395, %v655
    %v657 = vadd.f32 %v640, %v642
    %v658 = vadd.f32 %v644, %v646
    %v659 = vadd.f32 %v648, %v650
    %v660 = vadd.f32 %v652, %v654
    %v661 = vadd.f32 %v657, %v658
    %v662 = vadd.f32 %v659, %v660
    %v663 = vadd.f32 %v661, %v662
    %v664 = vadd.f32 %v663, %v656
    %s665 = sld [smem:[#allocation22 + $0x3]]
    %v666 = vstv %s665
    %v667 = vadd.f32 %v664, %v666
    %668 = vadd.xlane.f32.xlu0 %v667
    %v669 = vpop.xlane.xlu0 %668
    %v670 = vrot.slane %v669, 4
    %v671 = vadd.f32 %v669, %v670
    %v672 = vrot.slane %v671, 2
    %v673 = vadd.f32 %v671, %v672
    %v674 = vrot.slane %v673, 1
    %v675 = vadd.f32 %v673, %v674
    %s676 = vtos %v675
    %v677 = vrcp.pop 1024.0
    %s678 = vtos %v677
    %s679 = smul.f32 %s676, %s678
    %v680 = vstv %s679
    %v681 = vsub.f32 %v667, %v680
    %v682 = vmul.f32 %v681, %v681
    %683 = vadd.xlane.f32.xlu0 %v682
    %v684 = vpop.xlane.xlu0 %683
    %v685 = vrot.slane %v684, 4
    %v686 = vadd.f32 %v684, %v685
    %v687 = vrot.slane %v686, 2
    %v688 = vadd.f32 %v686, %v687
    %v689 = vrot.slane %v688, 1
    %v690 = vadd.f32 %v688, %v689
    %s691 = vtos %v690
    %v692 = vrcp.pop 1024.0
    %s693 = vtos %v692
    %s694 = smul.f32 %s691, %s693
    %s695 = sadd.f32 %s694, 1e-05
    %v696 = vstv %s695
    %v697 = vrsqrt.pop %v696
    %s698 = vtos %v697
    %v699 = vstv %s698
    %v700 = vmul.f32 %v681, %v699
    %s701 = sld [smem:[#allocation23 + $0x3]]
    %v702 = vstv %s701
    %v703 = vmul.f32 %v700, %v702
    %s704 = sld [smem:[#allocation25 + $0x3]]
    %v705 = vstv %s704
    %v706 = vadd.f32 %v703, %v705
    %v707 = vmax.f32 %v706, 0.0
    %s708 = sld [smem:[#allocation20 + $0x200]]
    %s709 = sld [smem:[#allocation20 + $0x201]]
    %s710 = sld [smem:[#allocation20 + $0x202]]
    %s711 = sld [smem:[#allocation20 + $0x203]]
    %s712 = sld [smem:[#allocation20 + $0x204]]
    %s713 = sld [smem:[#allocation20 + $0x205]]
    %s714 = sld [smem:[#allocation20 + $0x206]]
    %s715 = sld [smem:[#allocation20 + $0x207]]
    %s716 = sld [smem:[#allocation20 + $0x208]]
    %v717 = vstv %s708
    %v718 = vmul.f32 %v292, %v717
    %v719 = vstv %s709
    %v720 = vmul.f32 %v294, %v719
    %v721 = vstv %s710
    %v722 = vmul.f32 %v297, %v721
    %v723 = vstv %s711
    %v724 = vmul.f32 %v341, %v723
    %v725 = vstv %s712
    %v726 = vmul.f32 %v343, %v725
    %v727 = vstv %s713
    %v728 = vmul.f32 %v346, %v727
    %v729 = vstv %s714
    %v730 = vmul.f32 %v390, %v729
    %v731 = vstv %s715
    %v732 = vmul.f32 %v392, %v731
    %v733 = vstv %s716
    %v734 = vmul.f32 %v395, %v733
    %v735 = vadd.f32 %v718, %v720
    %v736 = vadd.f32 %v722, %v724
    %v737 = vadd.f32 %v726, %v728
    %v738 = vadd.f32 %v730, %v732
    %v739 = vadd.f32 %v735, %v736
    %v740 = vadd.f32 %v737, %v738
    %v741 = vadd.f32 %v739, %v740
    %v742 = vadd.f32 %v741, %v734
    %s743 = sld [smem:[#allocation22 + $0x4]]
    %v744 = vstv %s743
    %v745 = vadd.f32 %v742, %v744
    %746 = vadd.xlane.f32.xlu0 %v745
    %v747 = vpop.xlane.xlu0 %746
    %v748 = vrot.slane %v747, 4
    %v749 = vadd.f32 %v747, %v748
    %v750 = vrot.slane %v749, 2
    %v751 = vadd.f32 %v749, %v750
    %v752 = vrot.slane %v751, 1
    %v753 = vadd.f32 %v751, %v752
    %s754 = vtos %v753
    %v755 = vrcp.pop 1024.0
    %s756 = vtos %v755
    %s757 = smul.f32 %s754, %s756
    %v758 = vstv %s757
    %v759 = vsub.f32 %v745, %v758
    %v760 = vmul.f32 %v759, %v759
    %761 = vadd.xlane.f32.xlu0 %v760
    %v762 = vpop.xlane.xlu0 %761
    %v763 = vrot.slane %v762, 4
    %v764 = vadd.f32 %v762, %v763
    %v765 = vrot.slane %v764, 2
    %v766 = vadd.f32 %v764, %v765
    %v767 = vrot.slane %v766, 1
    %v768 = vadd.f32 %v766, %v767
    %s769 = vtos %v768
    %v770 = vrcp.pop 1024.0
    %s771 = vtos %v770
    %s772 = smul.f32 %s769, %s771
    %s773 = sadd.f32 %s772, 1e-05
    %v774 = vstv %s773
    %v775 = vrsqrt.pop %v774
    %s776 = vtos %v775
    %v777 = vstv %s776
    %v778 = vmul.f32 %v759, %v777
    %s779 = sld [smem:[#allocation23 + $0x4]]
    %v780 = vstv %s779
    %v781 = vmul.f32 %v778, %v780
    %s782 = sld [smem:[#allocation25 + $0x4]]
    %v783 = vstv %s782
    %v784 = vadd.f32 %v781, %v783
    %v785 = vmax.f32 %v784, 0.0
    %s786 = sld [smem:[#allocation20 + $0x280]]
    %s787 = sld [smem:[#allocation20 + $0x281]]
    %s788 = sld [smem:[#allocation20 + $0x282]]
    %s789 = sld [smem:[#allocation20 + $0x283]]
    %s790 = sld [smem:[#allocation20 + $0x284]]
    %s791 = sld [smem:[#allocation20 + $0x285]]
    %s792 = sld [smem:[#allocation20 + $0x286]]
    %s793 = sld [smem:[#allocation20 + $0x287]]
    %s794 = sld [smem:[#allocation20 + $0x288]]
    %v795 = vstv %s786
    %v796 = vmul.f32 %v292, %v795
    %v797 = vstv %s787
    %v798 = vmul.f32 %v294, %v797
    %v799 = vstv %s788
    %v800 = vmul.f32 %v297, %v799
    %v801 = vstv %s789
    %v802 = vmul.f32 %v341, %v801
    %v803 = vstv %s790
    %v804 = vmul.f32 %v343, %v803
    %v805 = vstv %s791
    %v806 = vmul.f32 %v346, %v805
    %v807 = vstv %s792
    %v808 = vmul.f32 %v390, %v807
    %v809 = vstv %s793
    %v810 = vmul.f32 %v392, %v809
    %v811 = vstv %s794
    %v812 = vmul.f32 %v395, %v811
    %v813 = vadd.f32 %v796, %v798
    %v814 = vadd.f32 %v800, %v802
    %v815 = vadd.f32 %v804, %v806
    %v816 = vadd.f32 %v808, %v810
    %v817 = vadd.f32 %v813, %v814
    %v818 = vadd.f32 %v815, %v816
    %v819 = vadd.f32 %v817, %v818
    %v820 = vadd.f32 %v819, %v812
    %s821 = sld [smem:[#allocation22 + $0x5]]
    %v822 = vstv %s821
    %v823 = vadd.f32 %v820, %v822
    %824 = vadd.xlane.f32.xlu0 %v823
    %v825 = vpop.xlane.xlu0 %824
    %v826 = vrot.slane %v825, 4
    %v827 = vadd.f32 %v825, %v826
    %v828 = vrot.slane %v827, 2
    %v829 = vadd.f32 %v827, %v828
    %v830 = vrot.slane %v829, 1
    %v831 = vadd.f32 %v829, %v830
    %s832 = vtos %v831
    %v833 = vrcp.pop 1024.0
    %s834 = vtos %v833
    %s835 = smul.f32 %s832, %s834
    %v836 = vstv %s835
    %v837 = vsub.f32 %v823, %v836
    %v838 = vmul.f32 %v837, %v837
    %839 = vadd.xlane.f32.xlu0 %v838
    %v840 = vpop.xlane.xlu0 %839
    %v841 = vrot.slane %v840, 4
    %v842 = vadd.f32 %v840, %v841
    %v843 = vrot.slane %v842, 2
    %v844 = vadd.f32 %v842, %v843
    %v845 = vrot.slane %v844, 1
    %v846 = vadd.f32 %v844, %v845
    %s847 = vtos %v846
    %v848 = vrcp.pop 1024.0
    %s849 = vtos %v848
    %s850 = smul.f32 %s847, %s849
    %s851 = sadd.f32 %s850, 1e-05
    %v852 = vstv %s851
    %v853 = vrsqrt.pop %v852
    %s854 = vtos %v853
    %v855 = vstv %s854
    %v856 = vmul.f32 %v837, %v855
    %s857 = sld [smem:[#allocation23 + $0x5]]
    %v858 = vstv %s857
    %v859 = vmul.f32 %v856, %v858
    %s860 = sld [smem:[#allocation25 + $0x5]]
    %v861 = vstv %s860
    %v862 = vadd.f32 %v859, %v861
    %v863 = vmax.f32 %v862, 0.0
    %s864 = sld [smem:[#allocation20 + $0x300]]
    %s865 = sld [smem:[#allocation20 + $0x301]]
    %s866 = sld [smem:[#allocation20 + $0x302]]
    %s867 = sld [smem:[#allocation20 + $0x303]]
    %s868 = sld [smem:[#allocation20 + $0x304]]
    %s869 = sld [smem:[#allocation20 + $0x305]]
    %s870 = sld [smem:[#allocation20 + $0x306]]
    %s871 = sld [smem:[#allocation20 + $0x307]]
    %s872 = sld [smem:[#allocation20 + $0x308]]
    %v873 = vstv %s864
    %v874 = vmul.f32 %v292, %v873
    %v875 = vstv %s865
    %v876 = vmul.f32 %v294, %v875
    %v877 = vstv %s866
    %v878 = vmul.f32 %v297, %v877
    %v879 = vstv %s867
    %v880 = vmul.f32 %v341, %v879
    %v881 = vstv %s868
    %v882 = vmul.f32 %v343, %v881
    %v883 = vstv %s869
    %v884 = vmul.f32 %v346, %v883
    %v885 = vstv %s870
    %v886 = vmul.f32 %v390, %v885
    %v887 = vstv %s871
    %v888 = vmul.f32 %v392, %v887
    %v889 = vstv %s872
    %v890 = vmul.f32 %v395, %v889
    %v891 = vadd.f32 %v874, %v876
    %v892 = vadd.f32 %v878, %v880
    %v893 = vadd.f32 %v882, %v884
    %v894 = vadd.f32 %v886, %v888
    %v895 = vadd.f32 %v891, %v892
    %v896 = vadd.f32 %v893, %v894
    %v897 = vadd.f32 %v895, %v896
    %v898 = vadd.f32 %v897, %v890
    %s899 = sld [smem:[#allocation22 + $0x6]]
    %v900 = vstv %s899
    %v901 = vadd.f32 %v898, %v900
    %902 = vadd.xlane.f32.xlu0 %v901
    %v903 = vpop.xlane.xlu0 %902
    %v904 = vrot.slane %v903, 4
    %v905 = vadd.f32 %v903, %v904
    %v906 = vrot.slane %v905, 2
    %v907 = vadd.f32 %v905, %v906
    %v908 = vrot.slane %v907, 1
    %v909 = vadd.f32 %v907, %v908
    %s910 = vtos %v909
    %v911 = vrcp.pop 1024.0
    %s912 = vtos %v911
    %s913 = smul.f32 %s910, %s912
    %v914 = vstv %s913
    %v915 = vsub.f32 %v901, %v914
    %v916 = vmul.f32 %v915, %v915
    %917 = vadd.xlane.f32.xlu0 %v916
    %v918 = vpop.xlane.xlu0 %917
    %v919 = vrot.slane %v918, 4
    %v920 = vadd.f32 %v918, %v919
    %v921 = vrot.slane %v920, 2
    %v922 = vadd.f32 %v920, %v921
    %v923 = vrot.slane %v922, 1
    %v924 = vadd.f32 %v922, %v923
    %s925 = vtos %v924
    %v926 = vrcp.pop 1024.0
    %s927 = vtos %v926
    %s928 = smul.f32 %s925, %s927
    %s929 = sadd.f32 %s928, 1e-05
    %v930 = vstv %s929
    %v931 = vrsqrt.pop %v930
    %s932 = vtos %v931
    %v933 = vstv %s932
    %v934 = vmul.f32 %v915, %v933
    %s935 = sld [smem:[#allocation23 + $0x6]]
    %v936 = vstv %s935
    %v937 = vmul.f32 %v934, %v936
    %s938 = sld [smem:[#allocation25 + $0x6]]
    %v939 = vstv %s938
    %v940 = vadd.f32 %v937, %v939
    %v941 = vmax.f32 %v940, 0.0
    %s942 = sld [smem:[#allocation20 + $0x380]]
    %s943 = sld [smem:[#allocation20 + $0x381]]
    %s944 = sld [smem:[#allocation20 + $0x382]]
    %s945 = sld [smem:[#allocation20 + $0x383]]
    %s946 = sld [smem:[#allocation20 + $0x384]]
    %s947 = sld [smem:[#allocation20 + $0x385]]
    %s948 = sld [smem:[#allocation20 + $0x386]]
    %s949 = sld [smem:[#allocation20 + $0x387]]
    %s950 = sld [smem:[#allocation20 + $0x388]]
    %v951 = vstv %s942
    %v952 = vmul.f32 %v292, %v951
    %v953 = vstv %s943
    %v954 = vmul.f32 %v294, %v953
    %v955 = vstv %s944
    %v956 = vmul.f32 %v297, %v955
    %v957 = vstv %s945
    %v958 = vmul.f32 %v341, %v957
    %v959 = vstv %s946
    %v960 = vmul.f32 %v343, %v959
    %v961 = vstv %s947
    %v962 = vmul.f32 %v346, %v961
    %v963 = vstv %s948
    %v964 = vmul.f32 %v390, %v963
    %v965 = vstv %s949
    %v966 = vmul.f32 %v392, %v965
    %v967 = vstv %s950
    %v968 = vmul.f32 %v395, %v967
    %v969 = vadd.f32 %v952, %v954
    %v970 = vadd.f32 %v956, %v958
    %v971 = vadd.f32 %v960, %v962
    %v972 = vadd.f32 %v964, %v966
    %v973 = vadd.f32 %v969, %v970
    %v974 = vadd.f32 %v971, %v972
    %v975 = vadd.f32 %v973, %v974
    %v976 = vadd.f32 %v975, %v968
    %s977 = sld [smem:[#allocation22 + $0x7]]
    %v978 = vstv %s977
    %v979 = vadd.f32 %v976, %v978
    %980 = vadd.xlane.f32.xlu0 %v979
    %v981 = vpop.xlane.xlu0 %980
    %v982 = vrot.slane %v981, 4
    %v983 = vadd.f32 %v981, %v982
    %v984 = vrot.slane %v983, 2
    %v985 = vadd.f32 %v983, %v984
    %v986 = vrot.slane %v985, 1
    %v987 = vadd.f32 %v985, %v986
    %s988 = vtos %v987
    %v989 = vrcp.pop 1024.0
    %s990 = vtos %v989
    %s991 = smul.f32 %s988, %s990
    %v992 = vstv %s991
    %v993 = vsub.f32 %v979, %v992
    %v994 = vmul.f32 %v993, %v993
    %995 = vadd.xlane.f32.xlu0 %v994
    %v996 = vpop.xlane.xlu0 %995
    %v997 = vrot.slane %v996, 4
    %v998 = vadd.f32 %v996, %v997
    %v999 = vrot.slane %v998, 2
    %v1000 = vadd.f32 %v998, %v999
    %v1001 = vrot.slane %v1000, 1
    %v1002 = vadd.f32 %v1000, %v1001
    %s1003 = vtos %v1002
    %v1004 = vrcp.pop 1024.0
    %s1005 = vtos %v1004
    %s1006 = smul.f32 %s1003, %s1005
    %s1007 = sadd.f32 %s1006, 1e-05
    %v1008 = vstv %s1007
    %v1009 = vrsqrt.pop %v1008
    %s1010 = vtos %v1009
    %v1011 = vstv %s1010
    %v1012 = vmul.f32 %v993, %v1011
    %s1013 = sld [smem:[#allocation23 + $0x7]]
    %v1014 = vstv %s1013
    %v1015 = vmul.f32 %v1012, %v1014
    %s1016 = sld [smem:[#allocation25 + $0x7]]
    %v1017 = vstv %s1016
    %v1018 = vadd.f32 %v1015, %v1017
    %v1019 = vmax.f32 %v1018, 0.0
    %v1020 = vld [vmem:[#allocation26] sm:$0xff]
    %v1021 = vld [vmem:[#allocation26 + $0x8] sm:$0xff]
    %v1022 = vld [vmem:[#allocation26 + $0x10] sm:$0xff]
    %v1023 = vld [vmem:[#allocation26 + $0x18] sm:$0xff]
    %v1024 = vld [vmem:[#allocation26 + $0x20] sm:$0xff]
    %v1025 = vld [vmem:[#allocation26 + $0x28] sm:$0xff]
    %v1026 = vld [vmem:[#allocation26 + $0x30] sm:$0xff]
    %v1027 = vld [vmem:[#allocation26 + $0x38] sm:$0xff]
    %v1028 = vld [vmem:[#allocation26 + $0x40] sm:$0xff]
    %v1029 = vld [vmem:[#allocation26 + $0x48] sm:$0xff]
    %v1030 = vld [vmem:[#allocation26 + $0x50] sm:$0xff]
    %v1031 = vld [vmem:[#allocation26 + $0x58] sm:$0xff]
    %v1032 = vld [vmem:[#allocation26 + $0x60] sm:$0xff]
    %v1033 = vld [vmem:[#allocation26 + $0x68] sm:$0xff]
    %v1034 = vld [vmem:[#allocation26 + $0x70] sm:$0xff]
    %v1035 = vld [vmem:[#allocation26 + $0x78] sm:$0xff]
    %v1036 = vld [vmem:[#allocation26 + $0x80] sm:$0xff]
    %v1037 = vld [vmem:[#allocation26 + $0x88] sm:$0xff]
    %v1038 = vld [vmem:[#allocation26 + $0x90] sm:$0xff]
    %v1039 = vld [vmem:[#allocation26 + $0x98] sm:$0xff]
    %v1040 = vld [vmem:[#allocation26 + $0xa0] sm:$0xff]
    %v1041 = vld [vmem:[#allocation26 + $0xa8] sm:$0xff]
    %v1042 = vld [vmem:[#allocation26 + $0xb0] sm:$0xff]
    %v1043 = vld [vmem:[#allocation26 + $0xb8] sm:$0xff]
    %v1044 = vld [vmem:[#allocation26 + $0xc0] sm:$0xff]
    %v1045 = vld [vmem:[#allocation26 + $0xc8] sm:$0xff]
    %v1046 = vld [vmem:[#allocation26 + $0xd0] sm:$0xff]
    %v1047 = vld [vmem:[#allocation26 + $0xd8] sm:$0xff]
    %v1048 = vld [vmem:[#allocation26 + $0xe0] sm:$0xff]
    %v1049 = vld [vmem:[#allocation26 + $0xe8] sm:$0xff]
    %v1050 = vld [vmem:[#allocation26 + $0xf0] sm:$0xff]
    %v1051 = vld [vmem:[#allocation26 + $0xf8] sm:$0xff]
    %v1052 = vld [vmem:[#allocation26 + $0x100] sm:$0xff]
    %v1053 = vld [vmem:[#allocation26 + $0x108] sm:$0xff]
    %v1054 = vld [vmem:[#allocation26 + $0x110] sm:$0xff]
    %v1055 = vld [vmem:[#allocation26 + $0x118] sm:$0xff]
    %v1056 = vld [vmem:[#allocation26 + $0x120] sm:$0xff]
    %v1057 = vld [vmem:[#allocation26 + $0x128] sm:$0xff]
    %v1058 = vld [vmem:[#allocation26 + $0x130] sm:$0xff]
    %v1059 = vld [vmem:[#allocation26 + $0x138] sm:$0xff]
    %v1060 = vld [vmem:[#allocation26 + $0x140] sm:$0xff]
    %v1061 = vld [vmem:[#allocation26 + $0x148] sm:$0xff]
    %v1062 = vld [vmem:[#allocation26 + $0x150] sm:$0xff]
    %v1063 = vld [vmem:[#allocation26 + $0x158] sm:$0xff]
    %v1064 = vld [vmem:[#allocation26 + $0x160] sm:$0xff]
    %v1065 = vld [vmem:[#allocation26 + $0x168] sm:$0xff]
    %v1066 = vld [vmem:[#allocation26 + $0x170] sm:$0xff]
    %v1067 = vld [vmem:[#allocation26 + $0x178] sm:$0xff]
    %v1068 = vld [vmem:[#allocation26 + $0x180] sm:$0xff]
    %v1069 = vld [vmem:[#allocation26 + $0x188] sm:$0xff]
    %v1070 = vld [vmem:[#allocation26 + $0x190] sm:$0xff]
    %v1071 = vld [vmem:[#allocation26 + $0x198] sm:$0xff]
    %v1072 = vld [vmem:[#allocation26 + $0x1a0] sm:$0xff]
    %v1073 = vld [vmem:[#allocation26 + $0x1a8] sm:$0xff]
    %v1074 = vld [vmem:[#allocation26 + $0x1b0] sm:$0xff]
    %v1075 = vld [vmem:[#allocation26 + $0x1b8] sm:$0xff]
    %v1076 = vld [vmem:[#allocation26 + $0x1c0] sm:$0xff]
    %v1077 = vld [vmem:[#allocation26 + $0x1c8] sm:$0xff]
    %v1078 = vld [vmem:[#allocation26 + $0x1d0] sm:$0xff]
    %v1079 = vld [vmem:[#allocation26 + $0x1d8] sm:$0xff]
    %v1080 = vld [vmem:[#allocation26 + $0x1e0] sm:$0xff]
    %v1081 = vld [vmem:[#allocation26 + $0x1e8] sm:$0xff]
    %v1082 = vld [vmem:[#allocation26 + $0x1f0] sm:$0xff]
    %v1083 = vld [vmem:[#allocation26 + $0x1f8] sm:$0xff]
    %v1084 = vld [vmem:[#allocation26 + $0x200] sm:$0xff]
    %v1085 = vld [vmem:[#allocation26 + $0x208] sm:$0xff]
    %v1086 = vld [vmem:[#allocation26 + $0x210] sm:$0xff]
    %v1087 = vld [vmem:[#allocation26 + $0x218] sm:$0xff]
    %v1088 = vld [vmem:[#allocation26 + $0x220] sm:$0xff]
    %v1089 = vld [vmem:[#allocation26 + $0x228] sm:$0xff]
    %v1090 = vld [vmem:[#allocation26 + $0x230] sm:$0xff]
    %v1091 = vld [vmem:[#allocation26 + $0x238] sm:$0xff]
    %v1092 = vld [vmem:[#allocation26 + $0x240] sm:$0xff]
    %v1093 = vld [vmem:[#allocation26 + $0x248] sm:$0xff]
    %v1094 = vld [vmem:[#allocation26 + $0x250] sm:$0xff]
    %v1095 = vld [vmem:[#allocation26 + $0x258] sm:$0xff]
    %v1096 = vld [vmem:[#allocation26 + $0x260] sm:$0xff]
    %v1097 = vld [vmem:[#allocation26 + $0x268] sm:$0xff]
    %v1098 = vld [vmem:[#allocation26 + $0x270] sm:$0xff]
    %v1099 = vld [vmem:[#allocation26 + $0x278] sm:$0xff]
    %v1100 = vld [vmem:[#allocation26 + $0x280] sm:$0xff]
    %v1101 = vld [vmem:[#allocation26 + $0x288] sm:$0xff]
    %v1102 = vld [vmem:[#allocation26 + $0x290] sm:$0xff]
    %v1103 = vld [vmem:[#allocation26 + $0x298] sm:$0xff]
    %v1104 = vld [vmem:[#allocation26 + $0x2a0] sm:$0xff]
    %v1105 = vld [vmem:[#allocation26 + $0x2a8] sm:$0xff]
    %v1106 = vld [vmem:[#allocation26 + $0x2b0] sm:$0xff]
    %v1107 = vld [vmem:[#allocation26 + $0x2b8] sm:$0xff]
    %v1108 = vld [vmem:[#allocation26 + $0x2c0] sm:$0xff]
    %v1109 = vld [vmem:[#allocation26 + $0x2c8] sm:$0xff]
    %v1110 = vld [vmem:[#allocation26 + $0x2d0] sm:$0xff]
    %v1111 = vld [vmem:[#allocation26 + $0x2d8] sm:$0xff]
    %v1112 = vld [vmem:[#allocation26 + $0x2e0] sm:$0xff]
    %v1113 = vld [vmem:[#allocation26 + $0x2e8] sm:$0xff]
    %v1114 = vld [vmem:[#allocation26 + $0x2f0] sm:$0xff]
    %v1115 = vld [vmem:[#allocation26 + $0x2f8] sm:$0xff]
    %v1116 = vld [vmem:[#allocation26 + $0x300] sm:$0xff]
    %v1117 = vld [vmem:[#allocation26 + $0x308] sm:$0xff]
    %v1118 = vld [vmem:[#allocation26 + $0x310] sm:$0xff]
    %v1119 = vld [vmem:[#allocation26 + $0x318] sm:$0xff]
    %v1120 = vld [vmem:[#allocation26 + $0x320] sm:$0xff]
    %v1121 = vld [vmem:[#allocation26 + $0x328] sm:$0xff]
    %v1122 = vld [vmem:[#allocation26 + $0x330] sm:$0xff]
    %v1123 = vld [vmem:[#allocation26 + $0x338] sm:$0xff]
    %v1124 = vld [vmem:[#allocation26 + $0x340] sm:$0xff]
    %v1125 = vld [vmem:[#allocation26 + $0x348] sm:$0xff]
    %v1126 = vld [vmem:[#allocation26 + $0x350] sm:$0xff]
    %v1127 = vld [vmem:[#allocation26 + $0x358] sm:$0xff]
    %v1128 = vld [vmem:[#allocation26 + $0x360] sm:$0xff]
    %v1129 = vld [vmem:[#allocation26 + $0x368] sm:$0xff]
    %v1130 = vld [vmem:[#allocation26 + $0x370] sm:$0xff]
    %v1131 = vld [vmem:[#allocation26 + $0x378] sm:$0xff]
    %v1132 = vld [vmem:[#allocation26 + $0x380] sm:$0xff]
    %v1133 = vld [vmem:[#allocation26 + $0x388] sm:$0xff]
    %v1134 = vld [vmem:[#allocation26 + $0x390] sm:$0xff]
    %v1135 = vld [vmem:[#allocation26 + $0x398] sm:$0xff]
    %v1136 = vld [vmem:[#allocation26 + $0x3a0] sm:$0xff]
    %v1137 = vld [vmem:[#allocation26 + $0x3a8] sm:$0xff]
    %v1138 = vld [vmem:[#allocation26 + $0x3b0] sm:$0xff]
    %v1139 = vld [vmem:[#allocation26 + $0x3b8] sm:$0xff]
    %v1140 = vld [vmem:[#allocation26 + $0x3c0] sm:$0xff]
    %v1141 = vld [vmem:[#allocation26 + $0x3c8] sm:$0xff]
    %v1142 = vld [vmem:[#allocation26 + $0x3d0] sm:$0xff]
    %v1143 = vld [vmem:[#allocation26 + $0x3d8] sm:$0xff]
    %v1144 = vld [vmem:[#allocation26 + $0x3e0] sm:$0xff]
    %v1145 = vld [vmem:[#allocation26 + $0x3e8] sm:$0xff]
    %v1146 = vld [vmem:[#allocation26 + $0x3f0] sm:$0xff]
    %v1147 = vld [vmem:[#allocation26 + $0x3f8] sm:$0xff]
    %v1148 = vld [vmem:[%s16] sm:$0x1]
    %v1150 = vlaneseq
    %v1151 = vshrl.u32 %v1150, 7
    %v1152 = vsub.s32 0, %v1151
    %v1153 = vrot.slane %v1148, %v1152
    %1155 = vmatprep.subr.mxu0 0.0
    %1156 = vmatpush1.msra.mxu0 %v1035
    %1157 = vmatprep.subr.mxu0 0.0
    %1158 = vmatpush1.msra.mxu0 %v1034
    %1159 = vmatprep.subr.mxu0 0.0
    %1160 = vmatpush1.msra.mxu0 %v1033
    %1161 = vmatprep.subr.mxu0 0.0
    %1162 = vmatpush1.msra.mxu0 %v1032
    %1163 = vmatprep.subr.mxu0 0.0
    %1164 = vmatpush1.msra.mxu0 %v1031
    %1165 = vmatprep.subr.mxu0 0.0
    %1166 = vmatpush1.msra.mxu0 %v1030
    %1167 = vmatprep.subr.mxu0 0.0
    %1168 = vmatpush1.msra.mxu0 %v1029
    %1169 = vmatprep.subr.mxu0 0.0
    %1170 = vmatpush1.msra.mxu0 %v1028
    %1171 = vmatprep.subr.mxu0 0.0
    %1172 = vmatpush1.msra.mxu0 %v1027
    %1173 = vmatprep.subr.mxu0 0.0
    %1174 = vmatpush1.msra.mxu0 %v1026
    %1175 = vmatprep.subr.mxu0 0.0
    %1176 = vmatpush1.msra.mxu0 %v1025
    %1177 = vmatprep.subr.mxu0 0.0
    %1178 = vmatpush1.msra.mxu0 %v1024
    %1179 = vmatprep.subr.mxu0 0.0
    %1180 = vmatpush1.msra.mxu0 %v1023
    %1181 = vmatprep.subr.mxu0 0.0
    %1182 = vmatpush1.msra.mxu0 %v1022
    %1183 = vmatprep.subr.mxu0 0.0
    %1184 = vmatpush1.msra.mxu0 %v1021
    %1185 = vmatprep.subr.mxu0 0.0
    %1186 = vmatpush1.msra.mxu0 %v1020
    %1187 = vmatprep.subr.mxu0 0.0
    %1188 = vmatpush2.msra.mxu0 %v1051
    %1189 = vmatprep.subr.mxu0 0.0
    %1190 = vmatpush2.msra.mxu0 %v1050
    %1191 = vmatprep.subr.mxu0 0.0
    %1192 = vmatpush2.msra.mxu0 %v1049
    %1193 = vmatprep.subr.mxu0 0.0
    %1194 = vmatpush2.msra.mxu0 %v1048
    %1195 = vmatprep.subr.mxu0 0.0
    %1196 = vmatpush2.msra.mxu0 %v1047
    %1197 = vmatprep.subr.mxu0 0.0
    %1198 = vmatpush2.msra.mxu0 %v1046
    %1199 = vmatprep.subr.mxu0 0.0
    %1200 = vmatpush2.msra.mxu0 %v1045
    %1201 = vmatprep.subr.mxu0 0.0
    %1202 = vmatpush2.msra.mxu0 %v1044
    %1203 = vmatprep.subr.mxu0 0.0
    %1204 = vmatpush2.msra.mxu0 %v1043
    %1205 = vmatprep.subr.mxu0 0.0
    %1206 = vmatpush2.msra.mxu0 %v1042
    %1207 = vmatprep.subr.mxu0 0.0
    %1208 = vmatpush2.msra.mxu0 %v1041
    %1209 = vmatprep.subr.mxu0 0.0
    %1210 = vmatpush2.msra.mxu0 %v1040
    %1211 = vmatprep.subr.mxu0 0.0
    %1212 = vmatpush2.msra.mxu0 %v1039
    %1213 = vmatprep.subr.mxu0 0.0
    %1214 = vmatpush2.msra.mxu0 %v1038
    %1215 = vmatprep.subr.mxu0 0.0
    %1216 = vmatpush2.msra.mxu0 %v1037
    %1217 = vmatprep.subr.mxu0 0.0
    %1218 = vmatpush2.msra.mxu0 %v1036
    %1219 = vmatprep.mubr.f32.mxu0 %v551
    %1220 = vmatmul.mubr.f32.gmra.mxu0 %v473
    %v1221 = vpop.f32.mrf.mxu0
    %v1222 = vadd.f32 %v1153, %v1221
    %v1223 = vpop.f32.mrf.mxu0
    %1224 = vdwg.mxu0
    %1225 = vmatprep.subr.mxu0 0.0
    %1226 = vmatpush1.msra.mxu0 %v1067
    %1227 = vmatprep.subr.mxu0 0.0
    %1228 = vmatpush1.msra.mxu0 %v1066
    %1229 = vmatprep.subr.mxu0 0.0
    %1230 = vmatpush1.msra.mxu0 %v1065
    %1231 = vmatprep.subr.mxu0 0.0
    %1232 = vmatpush1.msra.mxu0 %v1064
    %1233 = vmatprep.subr.mxu0 0.0
    %1234 = vmatpush1.msra.mxu0 %v1063
    %1235 = vmatprep.subr.mxu0 0.0
    %1236 = vmatpush1.msra.mxu0 %v1062
    %1237 = vmatprep.subr.mxu0 0.0
    %1238 = vmatpush1.msra.mxu0 %v1061
    %1239 = vmatprep.subr.mxu0 0.0
    %1240 = vmatpush1.msra.mxu0 %v1060
    %1241 = vmatprep.subr.mxu0 0.0
    %1242 = vmatpush1.msra.mxu0 %v1059
    %1243 = vmatprep.subr.mxu0 0.0
    %1244 = vmatpush1.msra.mxu0 %v1058
    %1245 = vmatprep.subr.mxu0 0.0
    %1246 = vmatpush1.msra.mxu0 %v1057
    %1247 = vmatprep.subr.mxu0 0.0
    %1248 = vmatpush1.msra.mxu0 %v1056
    %1249 = vmatprep.subr.mxu0 0.0
    %1250 = vmatpush1.msra.mxu0 %v1055
    %1251 = vmatprep.subr.mxu0 0.0
    %1252 = vmatpush1.msra.mxu0 %v1054
    %1253 = vmatprep.subr.mxu0 0.0
    %1254 = vmatpush1.msra.mxu0 %v1053
    %1255 = vmatprep.subr.mxu0 0.0
    %1256 = vmatpush1.msra.mxu0 %v1052
    %1257 = vmatprep.subr.mxu0 0.0
    %1258 = vmatpush2.msra.mxu0 %v1083
    %1259 = vmatprep.subr.mxu0 0.0
    %1260 = vmatpush2.msra.mxu0 %v1082
    %1261 = vmatprep.subr.mxu0 0.0
    %1262 = vmatpush2.msra.mxu0 %v1081
    %1263 = vmatprep.subr.mxu0 0.0
    %1264 = vmatpush2.msra.mxu0 %v1080
    %1265 = vmatprep.subr.mxu0 0.0
    %1266 = vmatpush2.msra.mxu0 %v1079
    %1267 = vmatprep.subr.mxu0 0.0
    %1268 = vmatpush2.msra.mxu0 %v1078
    %1269 = vmatprep.subr.mxu0 0.0
    %1270 = vmatpush2.msra.mxu0 %v1077
    %1271 = vmatprep.subr.mxu0 0.0
    %1272 = vmatpush2.msra.mxu0 %v1076
    %1273 = vmatprep.subr.mxu0 0.0
    %1274 = vmatpush2.msra.mxu0 %v1075
    %1275 = vmatprep.subr.mxu0 0.0
    %1276 = vmatpush2.msra.mxu0 %v1074
    %1277 = vmatprep.subr.mxu0 0.0
    %1278 = vmatpush2.msra.mxu0 %v1073
    %1279 = vmatprep.subr.mxu0 0.0
    %1280 = vmatpush2.msra.mxu0 %v1072
    %1281 = vmatprep.subr.mxu0 0.0
    %1282 = vmatpush2.msra.mxu0 %v1071
    %1283 = vmatprep.subr.mxu0 0.0
    %1284 = vmatpush2.msra.mxu0 %v1070
    %1285 = vmatprep.subr.mxu0 0.0
    %1286 = vmatpush2.msra.mxu0 %v1069
    %1287 = vmatprep.subr.mxu0 0.0
    %1288 = vmatpush2.msra.mxu0 %v1068
    %1289 = vmatprep.mubr.f32.mxu0 %v707
    %1290 = vmatmul.mubr.f32.gmra.mxu0 %v629
    %v1291 = vpop.f32.mrf.mxu0
    %v1292 = vadd.f32 %v1222, %v1291
    %v1293 = vpop.f32.mrf.mxu0
    %1294 = vdwg.mxu0
    %1295 = vmatprep.subr.mxu0 0.0
    %1296 = vmatpush1.msra.mxu0 %v1099
    %1297 = vmatprep.subr.mxu0 0.0
    %1298 = vmatpush1.msra.mxu0 %v1098
    %1299 = vmatprep.subr.mxu0 0.0
    %1300 = vmatpush1.msra.mxu0 %v1097
    %1301 = vmatprep.subr.mxu0 0.0
    %1302 = vmatpush1.msra.mxu0 %v1096
    %1303 = vmatprep.subr.mxu0 0.0
    %1304 = vmatpush1.msra.mxu0 %v1095
    %1305 = vmatprep.subr.mxu0 0.0
    %1306 = vmatpush1.msra.mxu0 %v1094
    %1307 = vmatprep.subr.mxu0 0.0
    %1308 = vmatpush1.msra.mxu0 %v1093
    %1309 = vmatprep.subr.mxu0 0.0
    %1310 = vmatpush1.msra.mxu0 %v1092
    %1311 = vmatprep.subr.mxu0 0.0
    %1312 = vmatpush1.msra.mxu0 %v1091
    %1313 = vmatprep.subr.mxu0 0.0
    %1314 = vmatpush1.msra.mxu0 %v1090
    %1315 = vmatprep.subr.mxu0 0.0
    %1316 = vmatpush1.msra.mxu0 %v1089
    %1317 = vmatprep.subr.mxu0 0.0
    %1318 = vmatpush1.msra.mxu0 %v1088
    %1319 = vmatprep.subr.mxu0 0.0
    %1320 = vmatpush1.msra.mxu0 %v1087
    %1321 = vmatprep.subr.mxu0 0.0
    %1322 = vmatpush1.msra.mxu0 %v1086
    %1323 = vmatprep.subr.mxu0 0.0
    %1324 = vmatpush1.msra.mxu0 %v1085
    %1325 = vmatprep.subr.mxu0 0.0
    %1326 = vmatpush1.msra.mxu0 %v1084
    %1327 = vmatprep.subr.mxu0 0.0
    %1328 = vmatpush2.msra.mxu0 %v1115
    %1329 = vmatprep.subr.mxu0 0.0
    %1330 = vmatpush2.msra.mxu0 %v1114
    %1331 = vmatprep.subr.mxu0 0.0
    %1332 = vmatpush2.msra.mxu0 %v1113
    %1333 = vmatprep.subr.mxu0 0.0
    %1334 = vmatpush2.msra.mxu0 %v1112
    %1335 = vmatprep.subr.mxu0 0.0
    %1336 = vmatpush2.msra.mxu0 %v1111
    %1337 = vmatprep.subr.mxu0 0.0
    %1338 = vmatpush2.msra.mxu0 %v1110
    %1339 = vmatprep.subr.mxu0 0.0
    %1340 = vmatpush2.msra.mxu0 %v1109
    %1341 = vmatprep.subr.mxu0 0.0
    %1342 = vmatpush2.msra.mxu0 %v1108
    %1343 = vmatprep.subr.mxu0 0.0
    %1344 = vmatpush2.msra.mxu0 %v1107
    %1345 = vmatprep.subr.mxu0 0.0
    %1346 = vmatpush2.msra.mxu0 %v1106
    %1347 = vmatprep.subr.mxu0 0.0
    %1348 = vmatpush2.msra.mxu0 %v1105
    %1349 = vmatprep.subr.mxu0 0.0
    %1350 = vmatpush2.msra.mxu0 %v1104
    %1351 = vmatprep.subr.mxu0 0.0
    %1352 = vmatpush2.msra.mxu0 %v1103
    %1353 = vmatprep.subr.mxu0 0.0
    %1354 = vmatpush2.msra.mxu0 %v1102
    %1355 = vmatprep.subr.mxu0 0.0
    %1356 = vmatpush2.msra.mxu0 %v1101
    %1357 = vmatprep.subr.mxu0 0.0
    %1358 = vmatpush2.msra.mxu0 %v1100
    %1359 = vmatprep.mubr.f32.mxu0 %v863
    %1360 = vmatmul.mubr.f32.gmra.mxu0 %v785
    %v1361 = vpop.f32.mrf.mxu0
    %v1362 = vadd.f32 %v1292, %v1361
    %v1363 = vpop.f32.mrf.mxu0
    %1364 = vdwg.mxu0
    %1365 = vmatprep.subr.mxu0 0.0
    %1366 = vmatpush1.msra.mxu0 %v1131
    %1367 = vmatprep.subr.mxu0 0.0
    %1368 = vmatpush1.msra.mxu0 %v1130
    %1369 = vmatprep.subr.mxu0 0.0
    %1370 = vmatpush1.msra.mxu0 %v1129
    %1371 = vmatprep.subr.mxu0 0.0
    %1372 = vmatpush1.msra.mxu0 %v1128
    %1373 = vmatprep.subr.mxu0 0.0
    %1374 = vmatpush1.msra.mxu0 %v1127
    %1375 = vmatprep.subr.mxu0 0.0
    %1376 = vmatpush1.msra.mxu0 %v1126
    %1377 = vmatprep.subr.mxu0 0.0
    %1378 = vmatpush1.msra.mxu0 %v1125
    %1379 = vmatprep.subr.mxu0 0.0
    %1380 = vmatpush1.msra.mxu0 %v1124
    %1381 = vmatprep.subr.mxu0 0.0
    %1382 = vmatpush1.msra.mxu0 %v1123
    %1383 = vmatprep.subr.mxu0 0.0
    %1384 = vmatpush1.msra.mxu0 %v1122
    %1385 = vmatprep.subr.mxu0 0.0
    %1386 = vmatpush1.msra.mxu0 %v1121
    %1387 = vmatprep.subr.mxu0 0.0
    %1388 = vmatpush1.msra.mxu0 %v1120
    %1389 = vmatprep.subr.mxu0 0.0
    %1390 = vmatpush1.msra.mxu0 %v1119
    %1391 = vmatprep.subr.mxu0 0.0
    %1392 = vmatpush1.msra.mxu0 %v1118
    %1393 = vmatprep.subr.mxu0 0.0
    %1394 = vmatpush1.msra.mxu0 %v1117
    %1395 = vmatprep.subr.mxu0 0.0
    %1396 = vmatpush1.msra.mxu0 %v1116
    %1397 = vmatprep.subr.mxu0 0.0
    %1398 = vmatpush2.msra.mxu0 %v1147
    %1399 = vmatprep.subr.mxu0 0.0
    %1400 = vmatpush2.msra.mxu0 %v1146
    %1401 = vmatprep.subr.mxu0 0.0
    %1402 = vmatpush2.msra.mxu0 %v1145
    %1403 = vmatprep.subr.mxu0 0.0
    %1404 = vmatpush2.msra.mxu0 %v1144
    %1405 = vmatprep.subr.mxu0 0.0
    %1406 = vmatpush2.msra.mxu0 %v1143
    %1407 = vmatprep.subr.mxu0 0.0
    %1408 = vmatpush2.msra.mxu0 %v1142
    %1409 = vmatprep.subr.mxu0 0.0
    %1410 = vmatpush2.msra.mxu0 %v1141
    %1411 = vmatprep.subr.mxu0 0.0
    %1412 = vmatpush2.msra.mxu0 %v1140
    %1413 = vmatprep.subr.mxu0 0.0
    %1414 = vmatpush2.msra.mxu0 %v1139
    %1415 = vmatprep.subr.mxu0 0.0
    %1416 = vmatpush2.msra.mxu0 %v1138
    %1417 = vmatprep.subr.mxu0 0.0
    %1418 = vmatpush2.msra.mxu0 %v1137
    %1419 = vmatprep.subr.mxu0 0.0
    %1420 = vmatpush2.msra.mxu0 %v1136
    %1421 = vmatprep.subr.mxu0 0.0
    %1422 = vmatpush2.msra.mxu0 %v1135
    %1423 = vmatprep.subr.mxu0 0.0
    %1424 = vmatpush2.msra.mxu0 %v1134
    %1425 = vmatprep.subr.mxu0 0.0
    %1426 = vmatpush2.msra.mxu0 %v1133
    %1427 = vmatprep.subr.mxu0 0.0
    %1428 = vmatpush2.msra.mxu0 %v1132
    %1429 = vmatprep.mubr.f32.mxu0 %v1019
    %1430 = vmatmul.mubr.f32.gmra.mxu0 %v941
    %v1431 = vpop.f32.mrf.mxu0
    %v1432 = vadd.f32 %v1362, %v1431
    %v1433 = vpop.f32.mrf.mxu0
    %1434 = vdwg.mxu0
    %v1435 = vrot.slane %v1432, 4
    %v1436 = vadd.f32 %v1432, %v1435
    %v1437 = vrot.slane %v1436, 2
    %v1438 = vadd.f32 %v1436, %v1437
    %v1439 = vrot.slane %v1438, 1
    %v1440 = vadd.f32 %v1438, %v1439
    %v1441 = vrcp.pop 8.0
    %v1442 = vmul.f32 %v1440, %v1441
    %v1443 = vsub.f32 %v1432, %v1442
    %v1444 = vmul.f32 %v1443, %v1443
    %v1445 = vrot.slane %v1444, 4
    %v1446 = vadd.f32 %v1444, %v1445
    %v1447 = vrot.slane %v1446, 2
    %v1448 = vadd.f32 %v1446, %v1447
    %v1449 = vrot.slane %v1448, 1
    %v1450 = vadd.f32 %v1448, %v1449
    %v1451 = vmul.f32 %v1450, %v1441
    %v1452 = vadd.f32 %v1451, 1e-05
    %v1453 = vrsqrt.pop %v1452
    %v1454 = vmul.f32 %v1443, %v1453
    %v1455 = vld [vmem:[%s17] sm:$0x1]
    %v1457 = vlaneseq
    %v1458 = vshrl.u32 %v1457, 7
    %v1459 = vsub.s32 0, %v1458
    %v1460 = vrot.slane %v1455, %v1459
    %v1462 = vmul.f32 %v1454, %v1460
    %v1463 = vld [vmem:[%s18] sm:$0x1]
    %v1465 = vlaneseq
    %v1466 = vshrl.u32 %v1465, 7
    %v1467 = vsub.s32 0, %v1466
    %v1468 = vrot.slane %v1463, %v1467
    %v1470 = vadd.f32 %v1462, %v1468
    %v1471 = vmax.f32 %v1470, 0.0
    %1472 = vst [vmem:[#allocation27] sm:$0xff] %v1471
    // Predicated region
    $region138: #{tpu_custom_call.1} parent=1 // pred_check
      _
    $region139: #{tpu_custom_call.1} parent=1 // pred_check_branch
      %1474 = sbr.rel (0) target = $region141
    $region140: #{tpu_custom_call.1} parent=1 // pred_region
      %s1476 = ssub.s32 128, 128
      %1477 = vsyncadd [#allocation4], %s1476
      %s1479 = sshll.u32 [#allocation27], 4
      %s1480 = int_to_ptr.vmem [resolvable:$true] %s1479
      %1482 = dma.vmem_to_hbm [thread:$0]  %s1480, 128, %s19, [#allocation4]
    $region141: #{tpu_custom_call.1} parent=1 // pred_fallthru
      _
    // Predicated region
    $region142: #{tpu_custom_call.1} parent=1 // pred_check
      _
    $region143: #{tpu_custom_call.1} parent=1 // pred_check_branch
      %1484 = sbr.rel (0) target = $region145
    $region144: #{tpu_custom_call.1} parent=1 // pred_region
      %1485 = dma.done [#allocation4], 128
    $region145: #{tpu_custom_call.1} parent=1 // pred_fallthru
      _
    %1486 = vsyncpa [#allocation3], 1
    %1487 = vsyncpa [#allocation8], 1
    %1488 = vsyncpa [#allocation11], 1
    %1489 = vsyncpa [#allocation14], 1
    %1490 = vsyncpa [#allocation17], 1
    %1491 = vsyncpa [#allocation4], 1
    %1492 = vsyncpa [#allocation5], 1
    %1493 = vsyncpa [#allocation6], 1
    %1494 = vsyncpa [#allocation21], 1
    %1495 = vsyncpa [#allocation24], 1

</llo_original>
